<compile_context>
chip_gen: v7x
topology: tpu7x:2x2x1
jax: 0.10.0
libtpu: 0.0.40
codegen_flags: <defaults>
</compile_context>

<pallas_src>
import functools

import jax
import jax.numpy as jnp
from jax.experimental import pallas as pl
from jax.experimental.pallas import tpu as pltpu

H1, H2 = 400, 200        # hidden sizes of the PyTorch module
H1P, H2P = 512, 256      # padded to multiples of 128 (lane-dense tiles)


# --------------------------------------------------------------------------- #
# Kernel
# --------------------------------------------------------------------------- #
def _cvae_kernel(
    # batch-tiled inputs
    xc_ref, c_ref, eps_ref,
    # weights (VMEM-resident across grid steps)
    w1_ref, b1_ref,            # encoder L1: (in+cond, H1P)
    w2_ref, b2_ref,            # encoder L2: (H1P, H2P)
    wmulv_ref, bmulv_ref,      # fused mu|logvar head: (H2P, 2*latent)
    wd1_ref, bd1_ref,          # decoder L1: (latent+cond, H2P)
    wd2_ref, bd2_ref,          # decoder L2: (H2P, H1P)
    wd3_ref, bd3_ref,          # decoder L3: (H1P, input_dim)
    # packed output [recon | mu | logvar]
    out_ref,
    # scratch
    zc_ref,                    # (TILE_B, latent+cond) bf16
    *, input_dim, latent_dim,
):
    f32 = jnp.float32
    bf16 = jnp.bfloat16

    xc = xc_ref[...]           # (TB, in+cond)  bf16  (concat done in wrapper)
    c = c_ref[...]             # (TB, cond)     bf16

    # ---------------- encoder ----------------
    h1 = jnp.dot(xc, w1_ref[...], preferred_element_type=f32) + b1_ref[...]
    h1 = jnp.maximum(h1, 0.0).astype(bf16)                    # ReLU (f32) -> bf16

    h2 = jnp.dot(h1, w2_ref[...], preferred_element_type=f32) + b2_ref[...]
    h2 = jnp.maximum(h2, 0.0).astype(bf16)

    # fused mu|logvar head: one MXU pass, slice the f32 result
    mulv = jnp.dot(h2, wmulv_ref[...], preferred_element_type=f32) + bmulv_ref[...]
    mu = mulv[:, :latent_dim]
    logvar = mulv[:, latent_dim:]

    # ---------------- reparameterize ----------------
    std = jnp.exp(0.5 * logvar)
    z = mu + eps_ref[...] * std           # eps passed in (torch.randn_like)

    # ---------------- decoder ----------------
    # build [z | c] once in VMEM scratch -> single fused matmul
    zc_ref[:, :latent_dim] = z.astype(bf16)
    zc_ref[:, latent_dim:] = c

    d1 = jnp.dot(zc_ref[...], wd1_ref[...], preferred_element_type=f32) + bd1_ref[...]
    d1 = jnp.maximum(d1, 0.0).astype(bf16)

    d2 = jnp.dot(d1, wd2_ref[...], preferred_element_type=f32) + bd2_ref[...]
    d2 = jnp.maximum(d2, 0.0).astype(bf16)

    logits = jnp.dot(d2, wd3_ref[...], preferred_element_type=f32) + bd3_ref[...]
    # sigmoid via EUP exp + approx reciprocal (keeps the divide off the VALU slot)
    recon = pl.reciprocal(1.0 + jnp.exp(-logits), approx=True)

    # packed, lane-contiguous output -> single writeback DMA per grid step
    out_ref[:, :input_dim] = recon
    out_ref[:, input_dim:] = mulv


# --------------------------------------------------------------------------- #
# Parameters
# --------------------------------------------------------------------------- #
def make_params(key, input_dim, condition_dim, latent_dim):
    """Synthetic parameters at the original PyTorch shapes ((in, out) layout, f32)."""
    def lin(k, fan_in, fan_out):
        kw, kb = jax.random.split(k)
        bound = 1.0 / jnp.sqrt(fan_in)
        w = jax.random.uniform(kw, (fan_in, fan_out), jnp.float32, -bound, bound)
        b = jax.random.uniform(kb, (1, fan_out), jnp.float32, -bound, bound)
        return w, b

    ks = jax.random.split(key, 7)
    w1, b1 = lin(ks[0], input_dim + condition_dim, H1)
    w2, b2 = lin(ks[1], H1, H2)
    wmu, bmu = lin(ks[2], H2, latent_dim)
    wlv, blv = lin(ks[3], H2, latent_dim)
    wd1, bd1 = lin(ks[4], latent_dim + condition_dim, H2)
    wd2, bd2 = lin(ks[5], H2, H1)
    wd3, bd3 = lin(ks[6], H1, input_dim)
    return dict(w1=w1, b1=b1, w2=w2, b2=b2, wmu=wmu, bmu=bmu, wlv=wlv, blv=blv,
                wd1=wd1, bd1=bd1, wd2=wd2, bd2=bd2, wd3=wd3, bd3=bd3)


def _pad_to(a, rows, cols):
    return jnp.pad(a, ((0, rows - a.shape[0]), (0, cols - a.shape[1])))


def pack_params_for_kernel(p):
    """Zero-pad hiddens to 128-multiples, fuse mu|logvar, cast weights to bf16.

    Zero-padded columns get zero bias, so ReLU keeps them exactly 0 and padded
    rows of the next layer contribute nothing: the padded math equals the
    original-module math.
    """
    bf16 = jnp.bfloat16
    latent2 = p["wmu"].shape[1] + p["wlv"].shape[1]
    return dict(
        w1=_pad_to(p["w1"], p["w1"].shape[0], H1P).astype(bf16),
        b1=_pad_to(p["b1"], 1, H1P),
        w2=_pad_to(p["w2"], H1P, H2P).astype(bf16),
        b2=_pad_to(p["b2"], 1, H2P),
        wmulv=_pad_to(jnp.concatenate([p["wmu"], p["wlv"]], axis=1),
                      H2P, latent2).astype(bf16),
        bmulv=jnp.concatenate([p["bmu"], p["blv"]], axis=1),
        wd1=_pad_to(p["wd1"], p["wd1"].shape[0], H2P).astype(bf16),
        bd1=_pad_to(p["bd1"], 1, H2P),
        wd2=_pad_to(p["wd2"], H2P, H1P).astype(bf16),
        bd2=_pad_to(p["bd2"], 1, H1P),
        wd3=_pad_to(p["wd3"], H1P, p["wd3"].shape[1]).astype(bf16),
        bd3=p["bd3"],
    )


# --------------------------------------------------------------------------- #
# Wrapper
# --------------------------------------------------------------------------- #
def _pick_tile_b(batch):
    for t in (128, 64, 32, 16, 8):
        if batch % t == 0:
            return t
    return batch   # tiny / ragged batches: one whole-batch block


@functools.partial(jax.jit, static_argnames=("input_dim", "condition_dim", "latent_dim"))
def cvae_forward(x, condition, eps, kparams, *, input_dim, condition_dim, latent_dim):
    B = x.shape[0]
    bf16 = jnp.bfloat16

    x2 = x.reshape(B, -1).astype(bf16)            # x.view(B, -1)
    c2 = condition.reshape(B, -1).astype(bf16)
    xc = jnp.concatenate([x2, c2], axis=1)        # torch.cat([x, condition], dim=1)
    eps = eps.astype(jnp.float32)

    tile_b = _pick_tile_b(B)
    grid = (B // tile_b,)

    def bmap(i):   # batch-tiled operands / output
        return (i, 0)

    def wmap(i):   # weights: constant index_map -> stay VMEM-resident
        return (0, 0)

    weight_names = ("w1", "b1", "w2", "b2", "wmulv", "bmulv",
                    "wd1", "bd1", "wd2", "bd2", "wd3", "bd3")
    weights = tuple(kparams[n] for n in weight_names)

    in_specs = [
        pl.BlockSpec((tile_b, input_dim + condition_dim), bmap),   # xc
        pl.BlockSpec((tile_b, condition_dim), bmap),               # c
        pl.BlockSpec((tile_b, latent_dim), bmap),                  # eps
    ] + [pl.BlockSpec(w.shape, wmap) for w in weights]

    out_width = input_dim + 2 * latent_dim
    out_specs = pl.BlockSpec((tile_b, out_width), bmap)
    out_shape = jax.ShapeDtypeStruct((B, out_width), jnp.float32)

    kernel = functools.partial(_cvae_kernel,
                               input_dim=input_dim, latent_dim=latent_dim)

    packed = pl.pallas_call(
        kernel,
        out_shape=out_shape,
        grid=grid,
        in_specs=in_specs,
        out_specs=out_specs,
        scratch_shapes=[pltpu.VMEM((tile_b, latent_dim + condition_dim), bf16)],
        compiler_params=pltpu.CompilerParams(
            dimension_semantics=("parallel",),
            vmem_limit_bytes=32 * 1024 * 1024),
    )(xc, c2, eps, *weights)

    recon = packed[:, :input_dim]
    mu = packed[:, input_dim:input_dim + latent_dim]
    logvar = packed[:, input_dim + latent_dim:]
    return recon, mu, logvar


# --------------------------------------------------------------------------- #
# Pure-JAX reference (mirrors the PyTorch forward; bf16 matmuls, f32 accum)
# --------------------------------------------------------------------------- #
def cvae_forward_ref(x, condition, eps, p):
    f32, bf16 = jnp.float32, jnp.bfloat16

    def mm(a, w):
        return jnp.dot(a.astype(bf16), w.astype(bf16), preferred_element_type=f32)

    B = x.shape[0]
    x2 = x.reshape(B, -1)
    c2 = condition.reshape(B, -1)
    xc = jnp.concatenate([x2, c2], axis=1)
    h = jax.nn.relu(mm(xc, p["w1"]) + p["b1"])
    h = jax.nn.relu(mm(h, p["w2"]) + p["b2"])
    mu = mm(h, p["wmu"]) + p["bmu"]
    logvar = mm(h, p["wlv"]) + p["blv"]
    z = mu + eps * jnp.exp(0.5 * logvar)
    zc = jnp.concatenate([z, c2], axis=1)
    d = jax.nn.relu(mm(zc, p["wd1"]) + p["bd1"])
    d = jax.nn.relu(mm(d, p["wd2"]) + p["bd2"])
    recon = jax.nn.sigmoid(mm(d, p["wd3"]) + p["bd3"])
    return recon, mu, logvar


# --------------------------------------------------------------------------- #
if __name__ == "__main__":
    input_dim, condition_dim, latent_dim = 64, 16, 8

    key = jax.random.PRNGKey(0)
    k_p, k_data = jax.random.split(key)
    params = make_params(k_p, input_dim, condition_dim, latent_dim)
    kparams = pack_params_for_kernel(params)

    # B=8 -> single whole-batch block; B=256 -> grid of 2 parallel batch tiles.
    for B in (8, 256):
        kx, kc, ke = jax.random.split(jax.random.fold_in(k_data, B), 3)
        x = jax.random.uniform(kx, (B, input_dim), jnp.float32)
        condition = jax.random.normal(kc, (B, condition_dim), jnp.float32)
        eps = jax.random.normal(ke, (B, latent_dim), jnp.float32)  # randn_like

        recon, mu, logvar = cvae_forward(
            x, condition, eps, kparams,
            input_dim=input_dim, condition_dim=condition_dim, latent_dim=latent_dim)
        jax.block_until_ready((recon, mu, logvar))

        r_ref, mu_ref, lv_ref = cvae_forward_ref(x, condition, eps, params)
        assert recon.shape == (B, input_dim)
        assert mu.shape == (B, latent_dim) and logvar.shape == (B, latent_dim)
        assert jnp.allclose(mu, mu_ref, atol=1e-2, rtol=1e-2)
        assert jnp.allclose(logvar, lv_ref, atol=1e-2, rtol=1e-2)
        assert jnp.allclose(recon, r_ref, atol=2e-2, rtol=2e-2)

    print("KERNEL_OK")
</pallas_src>

<mosaic_0001>
module attributes {stable_mosaic.version = 11 : i64} {
  func.func @_cvae_kernel(%arg0: i32, %arg1: memref<8x80xbf16, #tpu.memory_space<vmem>>, %arg2: memref<8x16xbf16, #tpu.memory_space<vmem>>, %arg3: memref<8x8xf32, #tpu.memory_space<vmem>>, %arg4: memref<80x512xbf16, #tpu.memory_space<vmem>>, %arg5: memref<1x512xf32, #tpu.memory_space<vmem>>, %arg6: memref<512x256xbf16, #tpu.memory_space<vmem>>, %arg7: memref<1x256xf32, #tpu.memory_space<vmem>>, %arg8: memref<256x16xbf16, #tpu.memory_space<vmem>>, %arg9: memref<1x16xf32, #tpu.memory_space<vmem>>, %arg10: memref<24x256xbf16, #tpu.memory_space<vmem>>, %arg11: memref<1x256xf32, #tpu.memory_space<vmem>>, %arg12: memref<256x512xbf16, #tpu.memory_space<vmem>>, %arg13: memref<1x512xf32, #tpu.memory_space<vmem>>, %arg14: memref<512x64xbf16, #tpu.memory_space<vmem>>, %arg15: memref<1x64xf32, #tpu.memory_space<vmem>>, %arg16: memref<8x80xf32, #tpu.memory_space<vmem>>, %arg17: memref<8x24xbf16, #tpu.memory_space<vmem>>) attributes {dimension_semantics = [#tpu.dimension_semantics<parallel>], iteration_bounds = array<i64: 1>, scalar_prefetch = 0 : i64, scratch_operands = 1 : i64, tpu.core_type = #tpu.core_type<tc>, window_params = [{transform_indices = @transform_0, window_bounds = array<i64: 8, 80>}, {transform_indices = @transform_1, window_bounds = array<i64: 8, 16>}, {transform_indices = @transform_2, window_bounds = array<i64: 8, 8>}, {pipeline_mode = #tpu.pipeline_mode<synchronous>, transform_indices = @transform_3, window_bounds = array<i64: 80, 512>}, {pipeline_mode = #tpu.pipeline_mode<synchronous>, transform_indices = @transform_4, window_bounds = array<i64: 1, 512>}, {pipeline_mode = #tpu.pipeline_mode<synchronous>, transform_indices = @transform_5, window_bounds = array<i64: 512, 256>}, {pipeline_mode = #tpu.pipeline_mode<synchronous>, transform_indices = @transform_6, window_bounds = array<i64: 1, 256>}, {pipeline_mode = #tpu.pipeline_mode<synchronous>, transform_indices = @transform_7, window_bounds = array<i64: 256, 16>}, {pipeline_mode = #tpu.pipeline_mode<synchronous>, transform_indices = @transform_8, window_bounds = array<i64: 1, 16>}, {pipeline_mode = #tpu.pipeline_mode<synchronous>, transform_indices = @transform_9, window_bounds = array<i64: 24, 256>}, {pipeline_mode = #tpu.pipeline_mode<synchronous>, transform_indices = @transform_10, window_bounds = array<i64: 1, 256>}, {pipeline_mode = #tpu.pipeline_mode<synchronous>, transform_indices = @transform_11, window_bounds = array<i64: 256, 512>}, {pipeline_mode = #tpu.pipeline_mode<synchronous>, transform_indices = @transform_12, window_bounds = array<i64: 1, 512>}, {pipeline_mode = #tpu.pipeline_mode<synchronous>, transform_indices = @transform_13, window_bounds = array<i64: 512, 64>}, {pipeline_mode = #tpu.pipeline_mode<synchronous>, transform_indices = @transform_14, window_bounds = array<i64: 1, 64>}, {transform_indices = @transform_15, window_bounds = array<i64: 8, 80>}]} {
    %c0 = arith.constant 0 : index
    %c0_0 = arith.constant 0 : index
    %0 = vector.load %arg1[%c0, %c0_0] : memref<8x80xbf16, #tpu.memory_space<vmem>>, vector<8x80xbf16>
    %c0_1 = arith.constant 0 : index
    %c0_2 = arith.constant 0 : index
    %1 = vector.load %arg2[%c0_1, %c0_2] : memref<8x16xbf16, #tpu.memory_space<vmem>>, vector<8x16xbf16>
    %c0_3 = arith.constant 0 : index
    %c0_4 = arith.constant 0 : index
    %2 = vector.load %arg4[%c0_3, %c0_4] : memref<80x512xbf16, #tpu.memory_space<vmem>>, vector<80x512xbf16>
    %cst = arith.constant dense<0.000000e+00> : vector<8x512xf32>
    %3 = tpu.matmul %0, %2, %cst {dimension_numbers = #tpu.dot_dimension_numbers<[1], [0], [0], [1], [0, 0, 1, 1], [], []>} : vector<8x80xbf16>, vector<80x512xbf16>, vector<8x512xf32> -> vector<8x512xf32>
    %c0_5 = arith.constant 0 : index
    %c0_6 = arith.constant 0 : index
    %4 = vector.load %arg5[%c0_5, %c0_6] : memref<1x512xf32, #tpu.memory_space<vmem>>, vector<1x512xf32>
    %5 = vector.broadcast %4 : vector<1x512xf32> to vector<8x512xf32>
    %6 = arith.addf %3, %5 : vector<8x512xf32>
    %cst_7 = arith.constant 0.000000e+00 : f32
    %7 = vector.broadcast %cst_7 : f32 to vector<8x512xf32>
    %8 = arith.maximumf %6, %7 : vector<8x512xf32>
    %9 = arith.truncf %8 : vector<8x512xf32> to vector<8x512xbf16>
    %c0_8 = arith.constant 0 : index
    %c0_9 = arith.constant 0 : index
    %10 = vector.load %arg6[%c0_8, %c0_9] : memref<512x256xbf16, #tpu.memory_space<vmem>>, vector<512x256xbf16>
    %cst_10 = arith.constant dense<0.000000e+00> : vector<8x256xf32>
    %11 = tpu.matmul %9, %10, %cst_10 {dimension_numbers = #tpu.dot_dimension_numbers<[1], [0], [0], [1], [0, 0, 1, 1], [], []>} : vector<8x512xbf16>, vector<512x256xbf16>, vector<8x256xf32> -> vector<8x256xf32>
    %c0_11 = arith.constant 0 : index
    %c0_12 = arith.constant 0 : index
    %12 = vector.load %arg7[%c0_11, %c0_12] : memref<1x256xf32, #tpu.memory_space<vmem>>, vector<1x256xf32>
    %13 = vector.broadcast %12 : vector<1x256xf32> to vector<8x256xf32>
    %14 = arith.addf %11, %13 : vector<8x256xf32>
    %cst_13 = arith.constant 0.000000e+00 : f32
    %15 = vector.broadcast %cst_13 : f32 to vector<8x256xf32>
    %16 = arith.maximumf %14, %15 : vector<8x256xf32>
    %17 = arith.truncf %16 : vector<8x256xf32> to vector<8x256xbf16>
    %c0_14 = arith.constant 0 : index
    %c0_15 = arith.constant 0 : index
    %18 = vector.load %arg8[%c0_14, %c0_15] : memref<256x16xbf16, #tpu.memory_space<vmem>>, vector<256x16xbf16>
    %cst_16 = arith.constant dense<0.000000e+00> : vector<8x16xf32>
    %19 = tpu.matmul %17, %18, %cst_16 {dimension_numbers = #tpu.dot_dimension_numbers<[1], [0], [0], [1], [0, 0, 1, 1], [], []>} : vector<8x256xbf16>, vector<256x16xbf16>, vector<8x16xf32> -> vector<8x16xf32>
    %c0_17 = arith.constant 0 : index
    %c0_18 = arith.constant 0 : index
    %20 = vector.load %arg9[%c0_17, %c0_18] : memref<1x16xf32, #tpu.memory_space<vmem>>, vector<1x16xf32>
    %21 = vector.broadcast %20 : vector<1x16xf32> to vector<8x16xf32>
    %22 = arith.addf %19, %21 : vector<8x16xf32>
    %23 = vector.extract_strided_slice %22 {offsets = [0, 0], sizes = [8, 8], strides = [1, 1]} : vector<8x16xf32> to vector<8x8xf32>
    %24 = vector.extract_strided_slice %22 {offsets = [0, 8], sizes = [8, 8], strides = [1, 1]} : vector<8x16xf32> to vector<8x8xf32>
    %cst_19 = arith.constant 5.000000e-01 : f32
    %25 = vector.broadcast %cst_19 : f32 to vector<8x8xf32>
    %26 = arith.mulf %25, %24 : vector<8x8xf32>
    %27 = math.exp %26 : vector<8x8xf32>
    %c0_20 = arith.constant 0 : index
    %c0_21 = arith.constant 0 : index
    %28 = vector.load %arg3[%c0_20, %c0_21] : memref<8x8xf32, #tpu.memory_space<vmem>>, vector<8x8xf32>
    %29 = arith.mulf %28, %27 : vector<8x8xf32>
    %30 = arith.addf %23, %29 : vector<8x8xf32>
    %31 = arith.truncf %30 : vector<8x8xf32> to vector<8x8xbf16>
    %c0_22 = arith.constant 0 : index
    %c0_23 = arith.constant 0 : index
    %32 = vector.load %arg17[%c0_22, %c0_23] : memref<8x24xbf16, #tpu.memory_space<vmem>>, vector<8x8xbf16>
    tpu.vector_store %arg17[%c0_22, %c0_23], %31 {strides = array<i32>} : memref<8x24xbf16, #tpu.memory_space<vmem>>, vector<8x8xbf16>,
    %c0_24 = arith.constant 0 : index
    %c8 = arith.constant 8 : index
    %33 = vector.load %arg17[%c0_24, %c8] : memref<8x24xbf16, #tpu.memory_space<vmem>>, vector<8x16xbf16>
    tpu.vector_store %arg17[%c0_24, %c8], %1 {strides = array<i32>} : memref<8x24xbf16, #tpu.memory_space<vmem>>, vector<8x16xbf16>,
    %c0_25 = arith.constant 0 : index
    %c0_26 = arith.constant 0 : index
    %34 = vector.load %arg17[%c0_25, %c0_26] : memref<8x24xbf16, #tpu.memory_space<vmem>>, vector<8x24xbf16>
    %c0_27 = arith.constant 0 : index
    %c0_28 = arith.constant 0 : index
    %35 = vector.load %arg10[%c0_27, %c0_28] : memref<24x256xbf16, #tpu.memory_space<vmem>>, vector<24x256xbf16>
    %cst_29 = arith.constant dense<0.000000e+00> : vector<8x256xf32>
    %36 = tpu.matmul %34, %35, %cst_29 {dimension_numbers = #tpu.dot_dimension_numbers<[1], [0], [0], [1], [0, 0, 1, 1], [], []>} : vector<8x24xbf16>, vector<24x256xbf16>, vector<8x256xf32> -> vector<8x256xf32>
    %c0_30 = arith.constant 0 : index
    %c0_31 = arith.constant 0 : index
    %37 = vector.load %arg11[%c0_30, %c0_31] : memref<1x256xf32, #tpu.memory_space<vmem>>, vector<1x256xf32>
    %38 = vector.broadcast %37 : vector<1x256xf32> to vector<8x256xf32>
    %39 = arith.addf %36, %38 : vector<8x256xf32>
    %cst_32 = arith.constant 0.000000e+00 : f32
    %40 = vector.broadcast %cst_32 : f32 to vector<8x256xf32>
    %41 = arith.maximumf %39, %40 : vector<8x256xf32>
    %42 = arith.truncf %41 : vector<8x256xf32> to vector<8x256xbf16>
    %c0_33 = arith.constant 0 : index
    %c0_34 = arith.constant 0 : index
    %43 = vector.load %arg12[%c0_33, %c0_34] : memref<256x512xbf16, #tpu.memory_space<vmem>>, vector<256x512xbf16>
    %cst_35 = arith.constant dense<0.000000e+00> : vector<8x512xf32>
    %44 = tpu.matmul %42, %43, %cst_35 {dimension_numbers = #tpu.dot_dimension_numbers<[1], [0], [0], [1], [0, 0, 1, 1], [], []>} : vector<8x256xbf16>, vector<256x512xbf16>, vector<8x512xf32> -> vector<8x512xf32>
    %c0_36 = arith.constant 0 : index
    %c0_37 = arith.constant 0 : index
    %45 = vector.load %arg13[%c0_36, %c0_37] : memref<1x512xf32, #tpu.memory_space<vmem>>, vector<1x512xf32>
    %46 = vector.broadcast %45 : vector<1x512xf32> to vector<8x512xf32>
    %47 = arith.addf %44, %46 : vector<8x512xf32>
    %cst_38 = arith.constant 0.000000e+00 : f32
    %48 = vector.broadcast %cst_38 : f32 to vector<8x512xf32>
    %49 = arith.maximumf %47, %48 : vector<8x512xf32>
    %50 = arith.truncf %49 : vector<8x512xf32> to vector<8x512xbf16>
    %c0_39 = arith.constant 0 : index
    %c0_40 = arith.constant 0 : index
    %51 = vector.load %arg14[%c0_39, %c0_40] : memref<512x64xbf16, #tpu.memory_space<vmem>>, vector<512x64xbf16>
    %cst_41 = arith.constant dense<0.000000e+00> : vector<8x64xf32>
    %52 = tpu.matmul %50, %51, %cst_41 {dimension_numbers = #tpu.dot_dimension_numbers<[1], [0], [0], [1], [0, 0, 1, 1], [], []>} : vector<8x512xbf16>, vector<512x64xbf16>, vector<8x64xf32> -> vector<8x64xf32>
    %c0_42 = arith.constant 0 : index
    %c0_43 = arith.constant 0 : index
    %53 = vector.load %arg15[%c0_42, %c0_43] : memref<1x64xf32, #tpu.memory_space<vmem>>, vector<1x64xf32>
    %54 = vector.broadcast %53 : vector<1x64xf32> to vector<8x64xf32>
    %55 = arith.addf %52, %54 : vector<8x64xf32>
    %cst_44 = arith.constant 0.000000e+00 : f32
    %56 = vector.broadcast %cst_44 : f32 to vector<8x64xf32>
    %57 = arith.subf %56, %55 : vector<8x64xf32>
    %58 = math.exp %57 : vector<8x64xf32>
    %cst_45 = arith.constant 1.000000e+00 : f32
    %59 = vector.broadcast %cst_45 : f32 to vector<8x64xf32>
    %60 = arith.addf %59, %58 : vector<8x64xf32>
    %61 = tpu.reciprocal %60 {approx = true} : vector<8x64xf32> -> vector<8x64xf32>
    %c0_46 = arith.constant 0 : index
    %c0_47 = arith.constant 0 : index
    %62 = vector.load %arg16[%c0_46, %c0_47] : memref<8x80xf32, #tpu.memory_space<vmem>>, vector<8x64xf32>
    tpu.vector_store %arg16[%c0_46, %c0_47], %61 {strides = array<i32>} : memref<8x80xf32, #tpu.memory_space<vmem>>, vector<8x64xf32>,
    %c0_48 = arith.constant 0 : index
    %c64 = arith.constant 64 : index
    %63 = vector.load %arg16[%c0_48, %c64] : memref<8x80xf32, #tpu.memory_space<vmem>>, vector<8x16xf32>
    tpu.vector_store %arg16[%c0_48, %c64], %22 {strides = array<i32>} : memref<8x80xf32, #tpu.memory_space<vmem>>, vector<8x16xf32>,
    return
  }
  func.func @transform_0(%arg0: i32) -> (i32, i32) {
    %c0_i32 = arith.constant 0 : i32
    %c0_i32_0 = arith.constant 0 : i32
    return %arg0, %c0_i32 : i32, i32
  }
  func.func @transform_1(%arg0: i32) -> (i32, i32) {
    %c0_i32 = arith.constant 0 : i32
    %c0_i32_0 = arith.constant 0 : i32
    return %arg0, %c0_i32 : i32, i32
  }
  func.func @transform_2(%arg0: i32) -> (i32, i32) {
    %c0_i32 = arith.constant 0 : i32
    %c0_i32_0 = arith.constant 0 : i32
    return %arg0, %c0_i32 : i32, i32
  }
  func.func @transform_3(%arg0: i32) -> (i32, i32) {
    %c0_i32 = arith.constant 0 : i32
    %c0_i32_0 = arith.constant 0 : i32
    %c0_i32_1 = arith.constant 0 : i32
    return %c0_i32, %c0_i32_0 : i32, i32
  }
  func.func @transform_4(%arg0: i32) -> (i32, i32) {
    %c0_i32 = arith.constant 0 : i32
    %c0_i32_0 = arith.constant 0 : i32
    %c0_i32_1 = arith.constant 0 : i32
    return %c0_i32, %c0_i32_0 : i32, i32
  }
  func.func @transform_5(%arg0: i32) -> (i32, i32) {
    %c0_i32 = arith.constant 0 : i32
    %c0_i32_0 = arith.constant 0 : i32
    %c0_i32_1 = arith.constant 0 : i32
    return %c0_i32, %c0_i32_0 : i32, i32
  }
  func.func @transform_6(%arg0: i32) -> (i32, i32) {
    %c0_i32 = arith.constant 0 : i32
    %c0_i32_0 = arith.constant 0 : i32
    %c0_i32_1 = arith.constant 0 : i32
    return %c0_i32, %c0_i32_0 : i32, i32
  }
  func.func @transform_7(%arg0: i32) -> (i32, i32) {
    %c0_i32 = arith.constant 0 : i32
    %c0_i32_0 = arith.constant 0 : i32
    %c0_i32_1 = arith.constant 0 : i32
    return %c0_i32, %c0_i32_0 : i32, i32
  }
  func.func @transform_8(%arg0: i32) -> (i32, i32) {
    %c0_i32 = arith.constant 0 : i32
    %c0_i32_0 = arith.constant 0 : i32
    %c0_i32_1 = arith.constant 0 : i32
    return %c0_i32, %c0_i32_0 : i32, i32
  }
  func.func @transform_9(%arg0: i32) -> (i32, i32) {
    %c0_i32 = arith.constant 0 : i32
    %c0_i32_0 = arith.constant 0 : i32
    %c0_i32_1 = arith.constant 0 : i32
    return %c0_i32, %c0_i32_0 : i32, i32
  }
  func.func @transform_10(%arg0: i32) -> (i32, i32) {
    %c0_i32 = arith.constant 0 : i32
    %c0_i32_0 = arith.constant 0 : i32
    %c0_i32_1 = arith.constant 0 : i32
    return %c0_i32, %c0_i32_0 : i32, i32
  }
  func.func @transform_11(%arg0: i32) -> (i32, i32) {
    %c0_i32 = arith.constant 0 : i32
    %c0_i32_0 = arith.constant 0 : i32
    %c0_i32_1 = arith.constant 0 : i32
    return %c0_i32, %c0_i32_0 : i32, i32
  }
  func.func @transform_12(%arg0: i32) -> (i32, i32) {
    %c0_i32 = arith.constant 0 : i32
    %c0_i32_0 = arith.constant 0 : i32
    %c0_i32_1 = arith.constant 0 : i32
    return %c0_i32, %c0_i32_0 : i32, i32
  }
  func.func @transform_13(%arg0: i32) -> (i32, i32) {
    %c0_i32 = arith.constant 0 : i32
    %c0_i32_0 = arith.constant 0 : i32
    %c0_i32_1 = arith.constant 0 : i32
    return %c0_i32, %c0_i32_0 : i32, i32
  }
  func.func @transform_14(%arg0: i32) -> (i32, i32) {
    %c0_i32 = arith.constant 0 : i32
    %c0_i32_0 = arith.constant 0 : i32
    %c0_i32_1 = arith.constant 0 : i32
    return %c0_i32, %c0_i32_0 : i32, i32
  }
  func.func @transform_15(%arg0: i32) -> (i32, i32) {
    %c0_i32 = arith.constant 0 : i32
    %c0_i32_0 = arith.constant 0 : i32
    return %arg0, %c0_i32 : i32, i32
  }
}

</mosaic_0001>

<llo_original>
// kernel: cvae_forward.1
$region0: #{cvae_forward.1}
  #allocation0 [shape = 'u32[]', space=smem, size = 0x4, offset = 0x4, fixed_abs, tag = 'smem constant byte address 0x4 - core index']
  #allocation1 [shape = 'u32[144,128]{1,0:T(1,128)}', space=vmem, size = 0x12000, scoped, tag = 'internal scratch']
  #allocation2 [shape = 'bf16[8,24]{1,0:T(8,128)(2,1)}', space=vmem, size = 0x800, scoped, tag = 'scratch operand']
  %s0 = inlined_call_operand.vmem [shape: bf16[8,80], index: 0, kind: input, shape index: {}]
  %s1 = inlined_call_operand.vmem [shape: bf16[8,16], index: 1, kind: input, shape index: {}]
  %s2 = inlined_call_operand.vmem [shape: f32[8,8], index: 2, kind: input, shape index: {}]
  %s3 = inlined_call_operand.hbm [shape: bf16[80,512], index: 3, kind: input, shape index: {}]
  %s4 = inlined_call_operand.vmem [shape: f32[1,512], index: 4, kind: input, shape index: {}]
  %s5 = inlined_call_operand.vmem [shape: bf16[512,256], index: 5, kind: input, shape index: {}]
  %s6 = inlined_call_operand.vmem [shape: f32[1,256], index: 6, kind: input, shape index: {}]
  %s7 = inlined_call_operand.vmem [shape: bf16[256,16], index: 7, kind: input, shape index: {}]
  %s8 = inlined_call_operand.vmem [shape: f32[1,16], index: 8, kind: input, shape index: {}]
  %s9 = inlined_call_operand.vmem [shape: bf16[24,256], index: 9, kind: input, shape index: {}]
  %s10 = inlined_call_operand.vmem [shape: f32[1,256], index: 10, kind: input, shape index: {}]
  %s11 = inlined_call_operand.hbm [shape: bf16[256,512], index: 11, kind: input, shape index: {}]
  %s12 = inlined_call_operand.vmem [shape: f32[1,512], index: 12, kind: input, shape index: {}]
  %s13 = inlined_call_operand.vmem [shape: bf16[512,64], index: 13, kind: input, shape index: {}]
  %s14 = inlined_call_operand.vmem [shape: f32[1,64], index: 14, kind: input, shape index: {}]
  %s15 = inlined_call_operand.vmem [shape: f32[8,80], index: 15, kind: output, shape index: {}]
  %s16 = sld [smem:[#allocation0]]
  $region78: #{cvae_forward.1} parent=0
    _
  %s18 = ssub.s32 1, %s16
  %s19 = scalar_select 0, %s18, %s16
  $region1: #{cvae_forward.1} parent=0
    #allocation3 [shape = 'u8[81920]{0}', space=vmem, size = 0x14000, scoped, tag = 'input window, operand 3, single buffered']
    #allocation4 [shape = 's32[1]{0}', space=sflag, size = 0x4, scoped, tag = 'scoped memory for cvae_forward.1']
    #allocation5 [shape = 'u8[262144]{0}', space=vmem, size = 0x40000, scoped, tag = 'input window, operand 11, single buffered']
    #allocation6 [shape = 's32[1]{0}', space=sflag, size = 0x4, scoped, tag = 'scoped memory for cvae_forward.1']
    %20 = vsyncpa [#allocation4], 0
    %21 = vsyncpa [#allocation6], 0
    // Predicated region
    $region2: #{cvae_forward.1} parent=1 // pred_check
      _
    $region3: #{cvae_forward.1} parent=1 // pred_check_branch
      %23 = sbr.rel (0) target = $region5
    $region4: #{cvae_forward.1} parent=1 // pred_region
      _
    $region5: #{cvae_forward.1} parent=1 // pred_fallthru
      _
    // Predicated region
    $region6: #{cvae_forward.1} parent=1 // pred_check
      _
    $region7: #{cvae_forward.1} parent=1 // pred_check_branch
      %25 = sbr.rel (0) target = $region9
    $region8: #{cvae_forward.1} parent=1 // pred_region
      _
    $region9: #{cvae_forward.1} parent=1 // pred_fallthru
      _
    // Predicated region
    $region10: #{cvae_forward.1} parent=1 // pred_check
      _
    $region11: #{cvae_forward.1} parent=1 // pred_check_branch
      %27 = sbr.rel (0) target = $region13
    $region12: #{cvae_forward.1} parent=1 // pred_region
      _
    $region13: #{cvae_forward.1} parent=1 // pred_fallthru
      _
    // Predicated region
    $region14: #{cvae_forward.1} parent=1 // pred_check
      _
    $region15: #{cvae_forward.1} parent=1 // pred_check_branch
      %29 = sbr.rel (0) target = $region17
    $region16: #{cvae_forward.1} parent=1 // pred_region
      %s31 = ssub.s32 2560, 2560
      %32 = vsyncadd [#allocation4], %s31
      %s33 = sshll.u32 [#allocation3], 4
      %s34 = int_to_ptr.vmem [resolvable:$true] %s33
      %39 = dma.hbm_to_vmem [thread:$0]  %s3, 2560, %s34, [#allocation4], 256, 256, 16
    $region17: #{cvae_forward.1} parent=1 // pred_fallthru
      _
    // Predicated region
    $region18: #{cvae_forward.1} parent=1 // pred_check
      _
    $region19: #{cvae_forward.1} parent=1 // pred_check_branch
      %41 = sbr.rel (0) target = $region21
    $region20: #{cvae_forward.1} parent=1 // pred_region
      _
    $region21: #{cvae_forward.1} parent=1 // pred_fallthru
      _
    // Predicated region
    $region22: #{cvae_forward.1} parent=1 // pred_check
      _
    $region23: #{cvae_forward.1} parent=1 // pred_check_branch
      %43 = sbr.rel (0) target = $region25
    $region24: #{cvae_forward.1} parent=1 // pred_region
      _
    $region25: #{cvae_forward.1} parent=1 // pred_fallthru
      _
    // Predicated region
    $region26: #{cvae_forward.1} parent=1 // pred_check
      _
    $region27: #{cvae_forward.1} parent=1 // pred_check_branch
      %45 = sbr.rel (0) target = $region29
    $region28: #{cvae_forward.1} parent=1 // pred_region
      _
    $region29: #{cvae_forward.1} parent=1 // pred_fallthru
      _
    // Predicated region
    $region30: #{cvae_forward.1} parent=1 // pred_check
      _
    $region31: #{cvae_forward.1} parent=1 // pred_check_branch
      %47 = sbr.rel (0) target = $region33
    $region32: #{cvae_forward.1} parent=1 // pred_region
      _
    $region33: #{cvae_forward.1} parent=1 // pred_fallthru
      _
    // Predicated region
    $region34: #{cvae_forward.1} parent=1 // pred_check
      _
    $region35: #{cvae_forward.1} parent=1 // pred_check_branch
      %49 = sbr.rel (0) target = $region37
    $region36: #{cvae_forward.1} parent=1 // pred_region
      _
    $region37: #{cvae_forward.1} parent=1 // pred_fallthru
      _
    // Predicated region
    $region38: #{cvae_forward.1} parent=1 // pred_check
      _
    $region39: #{cvae_forward.1} parent=1 // pred_check_branch
      %51 = sbr.rel (0) target = $region41
    $region40: #{cvae_forward.1} parent=1 // pred_region
      _
    $region41: #{cvae_forward.1} parent=1 // pred_fallthru
      _
    // Predicated region
    $region42: #{cvae_forward.1} parent=1 // pred_check
      _
    $region43: #{cvae_forward.1} parent=1 // pred_check_branch
      %53 = sbr.rel (0) target = $region45
    $region44: #{cvae_forward.1} parent=1 // pred_region
      _
    $region45: #{cvae_forward.1} parent=1 // pred_fallthru
      _
    // Predicated region
    $region46: #{cvae_forward.1} parent=1 // pred_check
      _
    $region47: #{cvae_forward.1} parent=1 // pred_check_branch
      %55 = sbr.rel (0) target = $region49
    $region48: #{cvae_forward.1} parent=1 // pred_region
      %s57 = ssub.s32 8192, 8192
      %58 = vsyncadd [#allocation6], %s57
      %s59 = sshll.u32 [#allocation5], 4
      %s60 = int_to_ptr.vmem [resolvable:$true] %s59
      %65 = dma.hbm_to_vmem [thread:$0]  %s11, 8192, %s60, [#allocation6], 256, 256, 16
    $region49: #{cvae_forward.1} parent=1 // pred_fallthru
      _
    // Predicated region
    $region50: #{cvae_forward.1} parent=1 // pred_check
      _
    $region51: #{cvae_forward.1} parent=1 // pred_check_branch
      %67 = sbr.rel (0) target = $region53
    $region52: #{cvae_forward.1} parent=1 // pred_region
      _
    $region53: #{cvae_forward.1} parent=1 // pred_fallthru
      _
    // Predicated region
    $region54: #{cvae_forward.1} parent=1 // pred_check
      _
    $region55: #{cvae_forward.1} parent=1 // pred_check_branch
      %69 = sbr.rel (0) target = $region57
    $region56: #{cvae_forward.1} parent=1 // pred_region
      _
    $region57: #{cvae_forward.1} parent=1 // pred_fallthru
      _
    // Predicated region
    $region58: #{cvae_forward.1} parent=1 // pred_check
      _
    $region59: #{cvae_forward.1} parent=1 // pred_check_branch
      %71 = sbr.rel (0) target = $region61
    $region60: #{cvae_forward.1} parent=1 // pred_region
      _
    $region61: #{cvae_forward.1} parent=1 // pred_fallthru
      _
    // Predicated region
    $region62: #{cvae_forward.1} parent=1 // pred_check
      _
    $region63: #{cvae_forward.1} parent=1 // pred_check_branch
      %73 = sbr.rel (0) target = $region65
    $region64: #{cvae_forward.1} parent=1 // pred_region
      %74 = dma.done [#allocation4], 2560
    $region65: #{cvae_forward.1} parent=1 // pred_fallthru
      _
    // Predicated region
    $region66: #{cvae_forward.1} parent=1 // pred_check
      _
    $region67: #{cvae_forward.1} parent=1 // pred_check_branch
      %76 = sbr.rel (0) target = $region69
    $region68: #{cvae_forward.1} parent=1 // pred_region
      %77 = dma.done [#allocation6], 8192
    $region69: #{cvae_forward.1} parent=1 // pred_fallthru
      _
    %v79 = vld [vmem:[%s0] sm:$0xf]
    %v80 = vld [vmem:[%s1] sm:$0xf]
    %v81 = vld [vmem:[#allocation3] sm:$0xff]
    %v82 = vld [vmem:[#allocation3 + $0x8] sm:$0xff]
    %v83 = vld [vmem:[#allocation3 + $0x10] sm:$0xff]
    %v84 = vld [vmem:[#allocation3 + $0x18] sm:$0xff]
    %v85 = vld [vmem:[#allocation3 + $0x20] sm:$0xff]
    %v86 = vld [vmem:[#allocation3 + $0x28] sm:$0xff]
    %v87 = vld [vmem:[#allocation3 + $0x30] sm:$0xff]
    %v88 = vld [vmem:[#allocation3 + $0x38] sm:$0xff]
    %v89 = vld [vmem:[#allocation3 + $0x40] sm:$0xff]
    %v90 = vld [vmem:[#allocation3 + $0x48] sm:$0xff]
    %v91 = vld [vmem:[#allocation3 + $0x50] sm:$0xff]
    %v92 = vld [vmem:[#allocation3 + $0x58] sm:$0xff]
    %v93 = vld [vmem:[#allocation3 + $0x60] sm:$0xff]
    %v94 = vld [vmem:[#allocation3 + $0x68] sm:$0xff]
    %v95 = vld [vmem:[#allocation3 + $0x70] sm:$0xff]
    %v96 = vld [vmem:[#allocation3 + $0x78] sm:$0xff]
    %v97 = vld [vmem:[#allocation3 + $0x80] sm:$0xff]
    %v98 = vld [vmem:[#allocation3 + $0x88] sm:$0xff]
    %v99 = vld [vmem:[#allocation3 + $0x90] sm:$0xff]
    %v100 = vld [vmem:[#allocation3 + $0x98] sm:$0xff]
    %v101 = vld [vmem:[%s4] sm:$0xf]
    %v103 = vlaneseq
    %v104 = vshrl.u32 %v103, 7
    %v105 = vsub.s32 0, %v104
    %v106 = vrot.slane %v101, %v105
    %v107 = vlaneseq
    %v108 = vshrl.u32 %v107, 7
    %v109 = vsub.s32 1, %v108
    %v110 = vrot.slane %v101, %v109
    %v111 = vlaneseq
    %v112 = vshrl.u32 %v111, 7
    %v113 = vsub.s32 2, %v112
    %v114 = vrot.slane %v101, %v113
    %v115 = vlaneseq
    %v116 = vshrl.u32 %v115, 7
    %v117 = vsub.s32 3, %v116
    %v118 = vrot.slane %v101, %v117
    %v143 = vunpack.c.l.b16 %v81
    %v144 = vunpack.c.h.b16 %v81
    %v145 = vunpack.c.l.b16 %v82
    %v146 = vunpack.c.h.b16 %v82
    %v147 = vunpack.c.l.b16 %v83
    %v148 = vunpack.c.h.b16 %v83
    %v149 = vunpack.c.l.b16 %v84
    %v150 = vunpack.c.h.b16 %v84
    %v151 = vunpack.c.l.b16 %v85
    %v152 = vunpack.c.h.b16 %v85
    %v153 = vunpack.c.l.b16 %v86
    %v154 = vunpack.c.h.b16 %v86
    %v155 = vunpack.c.l.b16 %v87
    %v156 = vunpack.c.h.b16 %v87
    %v157 = vunpack.c.l.b16 %v88
    %v158 = vunpack.c.h.b16 %v88
    %v159 = vunpack.c.l.b16 %v89
    %v160 = vunpack.c.h.b16 %v89
    %v161 = vunpack.c.l.b16 %v90
    %v162 = vunpack.c.h.b16 %v90
    %v163 = vunpack.c.l.b16 %v91
    %v164 = vunpack.c.h.b16 %v91
    %v165 = vunpack.c.l.b16 %v92
    %v166 = vunpack.c.h.b16 %v92
    %v167 = vunpack.c.l.b16 %v93
    %v168 = vunpack.c.h.b16 %v93
    %v169 = vunpack.c.l.b16 %v94
    %v170 = vunpack.c.h.b16 %v94
    %v171 = vunpack.c.l.b16 %v95
    %v172 = vunpack.c.h.b16 %v95
    %v173 = vunpack.c.l.b16 %v96
    %v174 = vunpack.c.h.b16 %v96
    %v175 = vunpack.c.l.b16 %v97
    %v176 = vunpack.c.h.b16 %v97
    %v177 = vunpack.c.l.b16 %v98
    %v178 = vunpack.c.h.b16 %v98
    %v179 = vunpack.c.l.b16 %v99
    %v180 = vunpack.c.h.b16 %v99
    %v181 = vunpack.c.l.b16 %v100
    %v182 = vunpack.c.h.b16 %v100
    %v183 = vpack.c.b16 %v147, %v143
    %v184 = vpack.c.b16 %v148, %v144
    %v185 = vpack.c.b16 %v149, %v145
    %v186 = vpack.c.b16 %v150, %v146
    %v187 = vpack.c.b16 %v155, %v151
    %v188 = vpack.c.b16 %v156, %v152
    %v189 = vpack.c.b16 %v157, %v153
    %v190 = vpack.c.b16 %v158, %v154
    %v191 = vpack.c.b16 %v163, %v159
    %v192 = vpack.c.b16 %v164, %v160
    %v193 = vpack.c.b16 %v165, %v161
    %v194 = vpack.c.b16 %v166, %v162
    %v195 = vpack.c.b16 %v171, %v167
    %v196 = vpack.c.b16 %v172, %v168
    %v197 = vpack.c.b16 %v173, %v169
    %v198 = vpack.c.b16 %v174, %v170
    %v199 = vpack.c.b16 %v179, %v175
    %v200 = vpack.c.b16 %v180, %v176
    %v201 = vpack.c.b16 %v181, %v177
    %v202 = vpack.c.b16 %v182, %v178
    %vm223 = vcmask 654336
    %v225 = vsel %vm223, %v79, 0
    %227 = vmatprep.subr.bf16.mxu0 %v184
    %228 = vmatpush1.bf16.msra.mxu0 %v183
    %229 = vmatprep.subr.bf16.mxu0 %v188
    %230 = vmatpush1.bf16.msra.mxu0 %v187
    %231 = vmatprep.subr.bf16.mxu0 %v192
    %232 = vmatpush1.bf16.msra.mxu0 %v191
    %233 = vmatprep.subr.bf16.mxu0 %v196
    %234 = vmatpush1.bf16.msra.mxu0 %v195
    %235 = vmatprep.subr.bf16.mxu0 %v200
    %236 = vmatpush1.bf16.msra.mxu0 %v199
    %237 = vmatprep.subr.bf16.mxu0 0
    %238 = vmatpush1.bf16.msra.mxu0 0
    %239 = vmatprep.subr.bf16.mxu0 0
    %240 = vmatpush1.bf16.msra.mxu0 0
    %241 = vmatprep.subr.bf16.mxu0 0
    %242 = vmatpush1.bf16.msra.mxu0 0
    %243 = vmatprep.subr.bf16.mxu0 0
    %244 = vmatpush1.bf16.msra.mxu0 0
    %245 = vmatprep.subr.bf16.mxu0 0
    %246 = vmatpush1.bf16.msra.mxu0 0
    %247 = vmatprep.subr.bf16.mxu0 0
    %248 = vmatpush1.bf16.msra.mxu0 0
    %249 = vmatprep.subr.bf16.mxu0 0
    %250 = vmatpush1.bf16.msra.mxu0 0
    %251 = vmatprep.subr.bf16.mxu0 0
    %252 = vmatpush1.bf16.msra.mxu0 0
    %253 = vmatprep.subr.bf16.mxu0 0
    %254 = vmatpush1.bf16.msra.mxu0 0
    %255 = vmatprep.subr.bf16.mxu0 0
    %256 = vmatpush1.bf16.msra.mxu0 0
    %257 = vmatprep.subr.bf16.mxu0 0
    %258 = vmatpush1.bf16.msra.mxu0 0
    %259 = vmatprep.mubr.bf16.mxu0 0
    %260 = vmatmul.mubr.bf16.gmra.mrb[0].mxu0 %v225
    %v261 = vpop.f32.mrb[0].mxu0
    %v262 = vadd.f32 %v106, %v261
    %v263 = vpop.f32.mrb[0].mxu0
    %v264 = vadd.f32 %v110, %v263
    %v265 = vpop.f32.mrb[0].mxu0
    %v266 = vpop.f32.mrb[0].mxu0
    %267 = vdwg.mxu0
    %268 = vmatprep.subr.bf16.mxu0 %v186
    %269 = vmatpush1.bf16.msra.mxu0 %v185
    %270 = vmatprep.subr.bf16.mxu0 %v190
    %271 = vmatpush1.bf16.msra.mxu0 %v189
    %272 = vmatprep.subr.bf16.mxu0 %v194
    %273 = vmatpush1.bf16.msra.mxu0 %v193
    %274 = vmatprep.subr.bf16.mxu0 %v198
    %275 = vmatpush1.bf16.msra.mxu0 %v197
    %276 = vmatprep.subr.bf16.mxu0 %v202
    %277 = vmatpush1.bf16.msra.mxu0 %v201
    %278 = vmatprep.subr.bf16.mxu0 0
    %279 = vmatpush1.bf16.msra.mxu0 0
    %280 = vmatprep.subr.bf16.mxu0 0
    %281 = vmatpush1.bf16.msra.mxu0 0
    %282 = vmatprep.subr.bf16.mxu0 0
    %283 = vmatpush1.bf16.msra.mxu0 0
    %284 = vmatprep.subr.bf16.mxu0 0
    %285 = vmatpush1.bf16.msra.mxu0 0
    %286 = vmatprep.subr.bf16.mxu0 0
    %287 = vmatpush1.bf16.msra.mxu0 0
    %288 = vmatprep.subr.bf16.mxu0 0
    %289 = vmatpush1.bf16.msra.mxu0 0
    %290 = vmatprep.subr.bf16.mxu0 0
    %291 = vmatpush1.bf16.msra.mxu0 0
    %292 = vmatprep.subr.bf16.mxu0 0
    %293 = vmatpush1.bf16.msra.mxu0 0
    %294 = vmatprep.subr.bf16.mxu0 0
    %295 = vmatpush1.bf16.msra.mxu0 0
    %296 = vmatprep.subr.bf16.mxu0 0
    %297 = vmatpush1.bf16.msra.mxu0 0
    %298 = vmatprep.subr.bf16.mxu0 0
    %299 = vmatpush1.bf16.msra.mxu0 0
    %300 = vmatprep.mubr.bf16.mxu0 0
    %301 = vmatmul.mubr.bf16.gmra.mrb[0].mxu0 %v225
    %v302 = vpop.f32.mrb[0].mxu0
    %v303 = vadd.f32 %v114, %v302
    %v304 = vpop.f32.mrb[0].mxu0
    %v305 = vadd.f32 %v118, %v304
    %v306 = vpop.f32.mrb[0].mxu0
    %v307 = vpop.f32.mrb[0].mxu0
    %308 = vdwg.mxu0
    %v309 = vmax.f32 %v262, 0.0
    %v310 = vmax.f32 %v264, 0.0
    %v311 = vmax.f32 %v303, 0.0
    %v312 = vmax.f32 %v305, 0.0
    %v313 = vpack.c.bf16 %v309, %v309
    %v314 = vpack.c.bf16 %v310, %v310
    %v315 = vpack.c.bf16 %v311, %v311
    %v316 = vpack.c.bf16 %v312, %v312
    %v317 = vld [vmem:[%s5] sm:$0xff]
    %v318 = vld [vmem:[%s5 + $0x8] sm:$0xff]
    %v319 = vld [vmem:[%s5 + $0x10] sm:$0xff]
    %v320 = vld [vmem:[%s5 + $0x18] sm:$0xff]
    %v321 = vld [vmem:[%s5 + $0x20] sm:$0xff]
    %v322 = vld [vmem:[%s5 + $0x28] sm:$0xff]
    %v323 = vld [vmem:[%s5 + $0x30] sm:$0xff]
    %v324 = vld [vmem:[%s5 + $0x38] sm:$0xff]
    %v325 = vld [vmem:[%s5 + $0x40] sm:$0xff]
    %v326 = vld [vmem:[%s5 + $0x48] sm:$0xff]
    %v327 = vld [vmem:[%s5 + $0x50] sm:$0xff]
    %v328 = vld [vmem:[%s5 + $0x58] sm:$0xff]
    %v329 = vld [vmem:[%s5 + $0x60] sm:$0xff]
    %v330 = vld [vmem:[%s5 + $0x68] sm:$0xff]
    %v331 = vld [vmem:[%s5 + $0x70] sm:$0xff]
    %v332 = vld [vmem:[%s5 + $0x78] sm:$0xff]
    %v333 = vld [vmem:[%s5 + $0x80] sm:$0xff]
    %v334 = vld [vmem:[%s5 + $0x88] sm:$0xff]
    %v335 = vld [vmem:[%s5 + $0x90] sm:$0xff]
    %v336 = vld [vmem:[%s5 + $0x98] sm:$0xff]
    %v337 = vld [vmem:[%s5 + $0xa0] sm:$0xff]
    %v338 = vld [vmem:[%s5 + $0xa8] sm:$0xff]
    %v339 = vld [vmem:[%s5 + $0xb0] sm:$0xff]
    %v340 = vld [vmem:[%s5 + $0xb8] sm:$0xff]
    %v341 = vld [vmem:[%s5 + $0xc0] sm:$0xff]
    %v342 = vld [vmem:[%s5 + $0xc8] sm:$0xff]
    %v343 = vld [vmem:[%s5 + $0xd0] sm:$0xff]
    %v344 = vld [vmem:[%s5 + $0xd8] sm:$0xff]
    %v345 = vld [vmem:[%s5 + $0xe0] sm:$0xff]
    %v346 = vld [vmem:[%s5 + $0xe8] sm:$0xff]
    %v347 = vld [vmem:[%s5 + $0xf0] sm:$0xff]
    %v348 = vld [vmem:[%s5 + $0xf8] sm:$0xff]
    %v349 = vld [vmem:[%s5 + $0x100] sm:$0xff]
    %v350 = vld [vmem:[%s5 + $0x108] sm:$0xff]
    %v351 = vld [vmem:[%s5 + $0x110] sm:$0xff]
    %v352 = vld [vmem:[%s5 + $0x118] sm:$0xff]
    %v353 = vld [vmem:[%s5 + $0x120] sm:$0xff]
    %v354 = vld [vmem:[%s5 + $0x128] sm:$0xff]
    %v355 = vld [vmem:[%s5 + $0x130] sm:$0xff]
    %v356 = vld [vmem:[%s5 + $0x138] sm:$0xff]
    %v357 = vld [vmem:[%s5 + $0x140] sm:$0xff]
    %v358 = vld [vmem:[%s5 + $0x148] sm:$0xff]
    %v359 = vld [vmem:[%s5 + $0x150] sm:$0xff]
    %v360 = vld [vmem:[%s5 + $0x158] sm:$0xff]
    %v361 = vld [vmem:[%s5 + $0x160] sm:$0xff]
    %v362 = vld [vmem:[%s5 + $0x168] sm:$0xff]
    %v363 = vld [vmem:[%s5 + $0x170] sm:$0xff]
    %v364 = vld [vmem:[%s5 + $0x178] sm:$0xff]
    %v365 = vld [vmem:[%s5 + $0x180] sm:$0xff]
    %v366 = vld [vmem:[%s5 + $0x188] sm:$0xff]
    %v367 = vld [vmem:[%s5 + $0x190] sm:$0xff]
    %v368 = vld [vmem:[%s5 + $0x198] sm:$0xff]
    %v369 = vld [vmem:[%s5 + $0x1a0] sm:$0xff]
    %v370 = vld [vmem:[%s5 + $0x1a8] sm:$0xff]
    %v371 = vld [vmem:[%s5 + $0x1b0] sm:$0xff]
    %v372 = vld [vmem:[%s5 + $0x1b8] sm:$0xff]
    %v373 = vld [vmem:[%s5 + $0x1c0] sm:$0xff]
    %v374 = vld [vmem:[%s5 + $0x1c8] sm:$0xff]
    %v375 = vld [vmem:[%s5 + $0x1d0] sm:$0xff]
    %v376 = vld [vmem:[%s5 + $0x1d8] sm:$0xff]
    %v377 = vld [vmem:[%s5 + $0x1e0] sm:$0xff]
    %v378 = vld [vmem:[%s5 + $0x1e8] sm:$0xff]
    %v379 = vld [vmem:[%s5 + $0x1f0] sm:$0xff]
    %v380 = vld [vmem:[%s5 + $0x1f8] sm:$0xff]
    %v381 = vld [vmem:[%s6] sm:$0x3]
    %v383 = vlaneseq
    %v384 = vshrl.u32 %v383, 7
    %v385 = vsub.s32 0, %v384
    %v386 = vrot.slane %v381, %v385
    %v387 = vlaneseq
    %v388 = vshrl.u32 %v387, 7
    %v389 = vsub.s32 1, %v388
    %v390 = vrot.slane %v381, %v389
    %v457 = vunpack.c.l.b16 %v317
    %v458 = vunpack.c.h.b16 %v317
    %v459 = vunpack.c.l.b16 %v318
    %v460 = vunpack.c.h.b16 %v318
    %v461 = vunpack.c.l.b16 %v319
    %v462 = vunpack.c.h.b16 %v319
    %v463 = vunpack.c.l.b16 %v320
    %v464 = vunpack.c.h.b16 %v320
    %v465 = vunpack.c.l.b16 %v321
    %v466 = vunpack.c.h.b16 %v321
    %v467 = vunpack.c.l.b16 %v322
    %v468 = vunpack.c.h.b16 %v322
    %v469 = vunpack.c.l.b16 %v323
    %v470 = vunpack.c.h.b16 %v323
    %v471 = vunpack.c.l.b16 %v324
    %v472 = vunpack.c.h.b16 %v324
    %v473 = vunpack.c.l.b16 %v325
    %v474 = vunpack.c.h.b16 %v325
    %v475 = vunpack.c.l.b16 %v326
    %v476 = vunpack.c.h.b16 %v326
    %v477 = vunpack.c.l.b16 %v327
    %v478 = vunpack.c.h.b16 %v327
    %v479 = vunpack.c.l.b16 %v328
    %v480 = vunpack.c.h.b16 %v328
    %v481 = vunpack.c.l.b16 %v329
    %v482 = vunpack.c.h.b16 %v329
    %v483 = vunpack.c.l.b16 %v330
    %v484 = vunpack.c.h.b16 %v330
    %v485 = vunpack.c.l.b16 %v331
    %v486 = vunpack.c.h.b16 %v331
    %v487 = vunpack.c.l.b16 %v332
    %v488 = vunpack.c.h.b16 %v332
    %v489 = vunpack.c.l.b16 %v333
    %v490 = vunpack.c.h.b16 %v333
    %v491 = vunpack.c.l.b16 %v334
    %v492 = vunpack.c.h.b16 %v334
    %v493 = vunpack.c.l.b16 %v335
    %v494 = vunpack.c.h.b16 %v335
    %v495 = vunpack.c.l.b16 %v336
    %v496 = vunpack.c.h.b16 %v336
    %v497 = vunpack.c.l.b16 %v337
    %v498 = vunpack.c.h.b16 %v337
    %v499 = vunpack.c.l.b16 %v338
    %v500 = vunpack.c.h.b16 %v338
    %v501 = vunpack.c.l.b16 %v339
    %v502 = vunpack.c.h.b16 %v339
    %v503 = vunpack.c.l.b16 %v340
    %v504 = vunpack.c.h.b16 %v340
    %v505 = vunpack.c.l.b16 %v341
    %v506 = vunpack.c.h.b16 %v341
    %v507 = vunpack.c.l.b16 %v342
    %v508 = vunpack.c.h.b16 %v342
    %v509 = vunpack.c.l.b16 %v343
    %v510 = vunpack.c.h.b16 %v343
    %v511 = vunpack.c.l.b16 %v344
    %v512 = vunpack.c.h.b16 %v344
    %v513 = vunpack.c.l.b16 %v345
    %v514 = vunpack.c.h.b16 %v345
    %v515 = vunpack.c.l.b16 %v346
    %v516 = vunpack.c.h.b16 %v346
    %v517 = vunpack.c.l.b16 %v347
    %v518 = vunpack.c.h.b16 %v347
    %v519 = vunpack.c.l.b16 %v348
    %v520 = vunpack.c.h.b16 %v348
    %v521 = vunpack.c.l.b16 %v349
    %v522 = vunpack.c.h.b16 %v349
    %v523 = vunpack.c.l.b16 %v350
    %v524 = vunpack.c.h.b16 %v350
    %v525 = vunpack.c.l.b16 %v351
    %v526 = vunpack.c.h.b16 %v351
    %v527 = vunpack.c.l.b16 %v352
    %v528 = vunpack.c.h.b16 %v352
    %v529 = vunpack.c.l.b16 %v353
    %v530 = vunpack.c.h.b16 %v353
    %v531 = vunpack.c.l.b16 %v354
    %v532 = vunpack.c.h.b16 %v354
    %v533 = vunpack.c.l.b16 %v355
    %v534 = vunpack.c.h.b16 %v355
    %v535 = vunpack.c.l.b16 %v356
    %v536 = vunpack.c.h.b16 %v356
    %v537 = vunpack.c.l.b16 %v357
    %v538 = vunpack.c.h.b16 %v357
    %v539 = vunpack.c.l.b16 %v358
    %v540 = vunpack.c.h.b16 %v358
    %v541 = vunpack.c.l.b16 %v359
    %v542 = vunpack.c.h.b16 %v359
    %v543 = vunpack.c.l.b16 %v360
    %v544 = vunpack.c.h.b16 %v360
    %v545 = vunpack.c.l.b16 %v361
    %v546 = vunpack.c.h.b16 %v361
    %v547 = vunpack.c.l.b16 %v362
    %v548 = vunpack.c.h.b16 %v362
    %v549 = vunpack.c.l.b16 %v363
    %v550 = vunpack.c.h.b16 %v363
    %v551 = vunpack.c.l.b16 %v364
    %v552 = vunpack.c.h.b16 %v364
    %v553 = vunpack.c.l.b16 %v365
    %v554 = vunpack.c.h.b16 %v365
    %v555 = vunpack.c.l.b16 %v366
    %v556 = vunpack.c.h.b16 %v366
    %v557 = vunpack.c.l.b16 %v367
    %v558 = vunpack.c.h.b16 %v367
    %v559 = vunpack.c.l.b16 %v368
    %v560 = vunpack.c.h.b16 %v368
    %v561 = vunpack.c.l.b16 %v369
    %v562 = vunpack.c.h.b16 %v369
    %v563 = vunpack.c.l.b16 %v370
    %v564 = vunpack.c.h.b16 %v370
    %v565 = vunpack.c.l.b16 %v371
    %v566 = vunpack.c.h.b16 %v371
    %v567 = vunpack.c.l.b16 %v372
    %v568 = vunpack.c.h.b16 %v372
    %v569 = vunpack.c.l.b16 %v373
    %v570 = vunpack.c.h.b16 %v373
    %v571 = vunpack.c.l.b16 %v374
    %v572 = vunpack.c.h.b16 %v374
    %v573 = vunpack.c.l.b16 %v375
    %v574 = vunpack.c.h.b16 %v375
    %v575 = vunpack.c.l.b16 %v376
    %v576 = vunpack.c.h.b16 %v376
    %v577 = vunpack.c.l.b16 %v377
    %v578 = vunpack.c.h.b16 %v377
    %v579 = vunpack.c.l.b16 %v378
    %v580 = vunpack.c.h.b16 %v378
    %v581 = vunpack.c.l.b16 %v379
    %v582 = vunpack.c.h.b16 %v379
    %v583 = vunpack.c.l.b16 %v380
    %v584 = vunpack.c.h.b16 %v380
    %v585 = vpack.c.b16 %v459, %v457
    %v586 = vpack.c.b16 %v460, %v458
    %v587 = vpack.c.b16 %v463, %v461
    %v588 = vpack.c.b16 %v464, %v462
    %v589 = vpack.c.b16 %v467, %v465
    %v590 = vpack.c.b16 %v468, %v466
    %v591 = vpack.c.b16 %v471, %v469
    %v592 = vpack.c.b16 %v472, %v470
    %v593 = vpack.c.b16 %v475, %v473
    %v594 = vpack.c.b16 %v476, %v474
    %v595 = vpack.c.b16 %v479, %v477
    %v596 = vpack.c.b16 %v480, %v478
    %v597 = vpack.c.b16 %v483, %v481
    %v598 = vpack.c.b16 %v484, %v482
    %v599 = vpack.c.b16 %v487, %v485
    %v600 = vpack.c.b16 %v488, %v486
    %v601 = vpack.c.b16 %v491, %v489
    %v602 = vpack.c.b16 %v492, %v490
    %v603 = vpack.c.b16 %v495, %v493
    %v604 = vpack.c.b16 %v496, %v494
    %v605 = vpack.c.b16 %v499, %v497
    %v606 = vpack.c.b16 %v500, %v498
    %v607 = vpack.c.b16 %v503, %v501
    %v608 = vpack.c.b16 %v504, %v502
    %v609 = vpack.c.b16 %v507, %v505
    %v610 = vpack.c.b16 %v508, %v506
    %v611 = vpack.c.b16 %v511, %v509
    %v612 = vpack.c.b16 %v512, %v510
    %v613 = vpack.c.b16 %v515, %v513
    %v614 = vpack.c.b16 %v516, %v514
    %v615 = vpack.c.b16 %v519, %v517
    %v616 = vpack.c.b16 %v520, %v518
    %v617 = vpack.c.b16 %v523, %v521
    %v618 = vpack.c.b16 %v524, %v522
    %v619 = vpack.c.b16 %v527, %v525
    %v620 = vpack.c.b16 %v528, %v526
    %v621 = vpack.c.b16 %v531, %v529
    %v622 = vpack.c.b16 %v532, %v530
    %v623 = vpack.c.b16 %v535, %v533
    %v624 = vpack.c.b16 %v536, %v534
    %v625 = vpack.c.b16 %v539, %v537
    %v626 = vpack.c.b16 %v540, %v538
    %v627 = vpack.c.b16 %v543, %v541
    %v628 = vpack.c.b16 %v544, %v542
    %v629 = vpack.c.b16 %v547, %v545
    %v630 = vpack.c.b16 %v548, %v546
    %v631 = vpack.c.b16 %v551, %v549
    %v632 = vpack.c.b16 %v552, %v550
    %v633 = vpack.c.b16 %v555, %v553
    %v634 = vpack.c.b16 %v556, %v554
    %v635 = vpack.c.b16 %v559, %v557
    %v636 = vpack.c.b16 %v560, %v558
    %v637 = vpack.c.b16 %v563, %v561
    %v638 = vpack.c.b16 %v564, %v562
    %v639 = vpack.c.b16 %v567, %v565
    %v640 = vpack.c.b16 %v568, %v566
    %v641 = vpack.c.b16 %v571, %v569
    %v642 = vpack.c.b16 %v572, %v570
    %v643 = vpack.c.b16 %v575, %v573
    %v644 = vpack.c.b16 %v576, %v574
    %v645 = vpack.c.b16 %v579, %v577
    %v646 = vpack.c.b16 %v580, %v578
    %v647 = vpack.c.b16 %v583, %v581
    %v648 = vpack.c.b16 %v584, %v582
    %713 = vmatprep.subr.bf16.mxu0 %v586
    %714 = vmatpush1.bf16.msra.mxu0 %v585
    %715 = vmatprep.subr.bf16.mxu0 %v588
    %716 = vmatpush1.bf16.msra.mxu0 %v587
    %717 = vmatprep.subr.bf16.mxu0 %v590
    %718 = vmatpush1.bf16.msra.mxu0 %v589
    %719 = vmatprep.subr.bf16.mxu0 %v592
    %720 = vmatpush1.bf16.msra.mxu0 %v591
    %721 = vmatprep.subr.bf16.mxu0 %v594
    %722 = vmatpush1.bf16.msra.mxu0 %v593
    %723 = vmatprep.subr.bf16.mxu0 %v596
    %724 = vmatpush1.bf16.msra.mxu0 %v595
    %725 = vmatprep.subr.bf16.mxu0 %v598
    %726 = vmatpush1.bf16.msra.mxu0 %v597
    %727 = vmatprep.subr.bf16.mxu0 %v600
    %728 = vmatpush1.bf16.msra.mxu0 %v599
    %729 = vmatprep.subr.bf16.mxu0 %v602
    %730 = vmatpush1.bf16.msra.mxu0 %v601
    %731 = vmatprep.subr.bf16.mxu0 %v604
    %732 = vmatpush1.bf16.msra.mxu0 %v603
    %733 = vmatprep.subr.bf16.mxu0 %v606
    %734 = vmatpush1.bf16.msra.mxu0 %v605
    %735 = vmatprep.subr.bf16.mxu0 %v608
    %736 = vmatpush1.bf16.msra.mxu0 %v607
    %737 = vmatprep.subr.bf16.mxu0 %v610
    %738 = vmatpush1.bf16.msra.mxu0 %v609
    %739 = vmatprep.subr.bf16.mxu0 %v612
    %740 = vmatpush1.bf16.msra.mxu0 %v611
    %741 = vmatprep.subr.bf16.mxu0 %v614
    %742 = vmatpush1.bf16.msra.mxu0 %v613
    %743 = vmatprep.subr.bf16.mxu0 %v616
    %744 = vmatpush1.bf16.msra.mxu0 %v615
    %745 = vmatprep.mubr.bf16.mxu0 %v314
    %746 = vmatmul.mubr.bf16.gmra.mrb[0].mxu0 %v313
    %v747 = vpop.f32.mrb[0].mxu0
    %v748 = vadd.f32 %v386, %v747
    %v749 = vpop.f32.mrb[0].mxu0
    %v750 = vadd.f32 %v390, %v749
    %v751 = vpop.f32.mrb[0].mxu0
    %v752 = vpop.f32.mrb[0].mxu0
    %753 = vdwg.mxu0
    %754 = vmatprep.subr.bf16.mxu0 %v618
    %755 = vmatpush1.bf16.msra.mxu0 %v617
    %756 = vmatprep.subr.bf16.mxu0 %v620
    %757 = vmatpush1.bf16.msra.mxu0 %v619
    %758 = vmatprep.subr.bf16.mxu0 %v622
    %759 = vmatpush1.bf16.msra.mxu0 %v621
    %760 = vmatprep.subr.bf16.mxu0 %v624
    %761 = vmatpush1.bf16.msra.mxu0 %v623
    %762 = vmatprep.subr.bf16.mxu0 %v626
    %763 = vmatpush1.bf16.msra.mxu0 %v625
    %764 = vmatprep.subr.bf16.mxu0 %v628
    %765 = vmatpush1.bf16.msra.mxu0 %v627
    %766 = vmatprep.subr.bf16.mxu0 %v630
    %767 = vmatpush1.bf16.msra.mxu0 %v629
    %768 = vmatprep.subr.bf16.mxu0 %v632
    %769 = vmatpush1.bf16.msra.mxu0 %v631
    %770 = vmatprep.subr.bf16.mxu0 %v634
    %771 = vmatpush1.bf16.msra.mxu0 %v633
    %772 = vmatprep.subr.bf16.mxu0 %v636
    %773 = vmatpush1.bf16.msra.mxu0 %v635
    %774 = vmatprep.subr.bf16.mxu0 %v638
    %775 = vmatpush1.bf16.msra.mxu0 %v637
    %776 = vmatprep.subr.bf16.mxu0 %v640
    %777 = vmatpush1.bf16.msra.mxu0 %v639
    %778 = vmatprep.subr.bf16.mxu0 %v642
    %779 = vmatpush1.bf16.msra.mxu0 %v641
    %780 = vmatprep.subr.bf16.mxu0 %v644
    %781 = vmatpush1.bf16.msra.mxu0 %v643
    %782 = vmatprep.subr.bf16.mxu0 %v646
    %783 = vmatpush1.bf16.msra.mxu0 %v645
    %784 = vmatprep.subr.bf16.mxu0 %v648
    %785 = vmatpush1.bf16.msra.mxu0 %v647
    %786 = vmatprep.mubr.bf16.mxu0 %v316
    %787 = vmatmul.mubr.bf16.gmra.mrb[0].mxu0 %v315
    %v788 = vpop.f32.mrb[0].mxu0
    %v789 = vadd.f32 %v748, %v788
    %v790 = vpop.f32.mrb[0].mxu0
    %v791 = vadd.f32 %v750, %v790
    %v792 = vpop.f32.mrb[0].mxu0
    %v793 = vpop.f32.mrb[0].mxu0
    %794 = vdwg.mxu0
    %v795 = vmax.f32 %v789, 0.0
    %v796 = vmax.f32 %v791, 0.0
    %v797 = vpack.c.bf16 %v795, %v795
    %v798 = vpack.c.bf16 %v796, %v796
    %v799 = vld [vmem:[%s7] sm:$0xf]
    %v800 = vld [vmem:[%s7 + $0x4] sm:$0xf]
    %v801 = vld [vmem:[%s7 + $0x8] sm:$0xf]
    %v802 = vld [vmem:[%s7 + $0xc] sm:$0xf]
    %v803 = vld [vmem:[%s7 + $0x10] sm:$0xf]
    %v804 = vld [vmem:[%s7 + $0x14] sm:$0xf]
    %v805 = vld [vmem:[%s7 + $0x18] sm:$0xf]
    %v806 = vld [vmem:[%s7 + $0x1c] sm:$0xf]
    %v807 = vld [vmem:[%s7 + $0x20] sm:$0xf]
    %v808 = vld [vmem:[%s7 + $0x24] sm:$0xf]
    %v809 = vld [vmem:[%s7 + $0x28] sm:$0xf]
    %v810 = vld [vmem:[%s7 + $0x2c] sm:$0xf]
    %v811 = vld [vmem:[%s7 + $0x30] sm:$0xf]
    %v812 = vld [vmem:[%s7 + $0x34] sm:$0xf]
    %v813 = vld [vmem:[%s7 + $0x38] sm:$0xf]
    %v814 = vld [vmem:[%s7 + $0x3c] sm:$0xf]
    %v815 = vld [vmem:[%s7 + $0x40] sm:$0xf]
    %v816 = vld [vmem:[%s7 + $0x44] sm:$0xf]
    %v817 = vld [vmem:[%s7 + $0x48] sm:$0xf]
    %v818 = vld [vmem:[%s7 + $0x4c] sm:$0xf]
    %v819 = vld [vmem:[%s7 + $0x50] sm:$0xf]
    %v820 = vld [vmem:[%s7 + $0x54] sm:$0xf]
    %v821 = vld [vmem:[%s7 + $0x58] sm:$0xf]
    %v822 = vld [vmem:[%s7 + $0x5c] sm:$0xf]
    %v823 = vld [vmem:[%s7 + $0x60] sm:$0xf]
    %v824 = vld [vmem:[%s7 + $0x64] sm:$0xf]
    %v825 = vld [vmem:[%s7 + $0x68] sm:$0xf]
    %v826 = vld [vmem:[%s7 + $0x6c] sm:$0xf]
    %v827 = vld [vmem:[%s7 + $0x70] sm:$0xf]
    %v828 = vld [vmem:[%s7 + $0x74] sm:$0xf]
    %v829 = vld [vmem:[%s7 + $0x78] sm:$0xf]
    %v830 = vld [vmem:[%s7 + $0x7c] sm:$0xf]
    %v831 = vld [vmem:[%s8] sm:$0x1]
    %v833 = vlaneseq
    %v834 = vshrl.u32 %v833, 7
    %v835 = vsub.s32 0, %v834
    %v836 = vrot.slane %v831, %v835
    %v870 = vunpack.c.l.b16 %v799
    %v871 = vunpack.c.l.b16 %v800
    %v872 = vunpack.c.l.b16 %v801
    %v873 = vunpack.c.l.b16 %v802
    %v874 = vunpack.c.l.b16 %v803
    %v875 = vunpack.c.l.b16 %v804
    %v876 = vunpack.c.l.b16 %v805
    %v877 = vunpack.c.l.b16 %v806
    %v878 = vunpack.c.l.b16 %v807
    %v879 = vunpack.c.l.b16 %v808
    %v880 = vunpack.c.l.b16 %v809
    %v881 = vunpack.c.l.b16 %v810
    %v882 = vunpack.c.l.b16 %v811
    %v883 = vunpack.c.l.b16 %v812
    %v884 = vunpack.c.l.b16 %v813
    %v885 = vunpack.c.l.b16 %v814
    %v886 = vunpack.c.l.b16 %v815
    %v887 = vunpack.c.l.b16 %v816
    %v888 = vunpack.c.l.b16 %v817
    %v889 = vunpack.c.l.b16 %v818
    %v890 = vunpack.c.l.b16 %v819
    %v891 = vunpack.c.l.b16 %v820
    %v892 = vunpack.c.l.b16 %v821
    %v893 = vunpack.c.l.b16 %v822
    %v894 = vunpack.c.l.b16 %v823
    %v895 = vunpack.c.l.b16 %v824
    %v896 = vunpack.c.l.b16 %v825
    %v897 = vunpack.c.l.b16 %v826
    %v898 = vunpack.c.l.b16 %v827
    %v899 = vunpack.c.l.b16 %v828
    %v900 = vunpack.c.l.b16 %v829
    %v901 = vunpack.c.l.b16 %v830
    %v902 = vpack.c.b16 %v871, %v870
    %v903 = vpack.c.b16 %v873, %v872
    %v904 = vpack.c.b16 %v875, %v874
    %v905 = vpack.c.b16 %v877, %v876
    %v906 = vpack.c.b16 %v879, %v878
    %v907 = vpack.c.b16 %v881, %v880
    %v908 = vpack.c.b16 %v883, %v882
    %v909 = vpack.c.b16 %v885, %v884
    %v910 = vpack.c.b16 %v887, %v886
    %v911 = vpack.c.b16 %v889, %v888
    %v912 = vpack.c.b16 %v891, %v890
    %v913 = vpack.c.b16 %v893, %v892
    %v914 = vpack.c.b16 %v895, %v894
    %v915 = vpack.c.b16 %v897, %v896
    %v916 = vpack.c.b16 %v899, %v898
    %v917 = vpack.c.b16 %v901, %v900
    %934 = vmatprep.subr.bf16.mxu0 0
    %935 = vmatpush1.bf16.msra.mxu0 %v902
    %936 = vmatprep.subr.bf16.mxu0 0
    %937 = vmatpush1.bf16.msra.mxu0 %v903
    %938 = vmatprep.subr.bf16.mxu0 0
    %939 = vmatpush1.bf16.msra.mxu0 %v904
    %940 = vmatprep.subr.bf16.mxu0 0
    %941 = vmatpush1.bf16.msra.mxu0 %v905
    %942 = vmatprep.subr.bf16.mxu0 0
    %943 = vmatpush1.bf16.msra.mxu0 %v906
    %944 = vmatprep.subr.bf16.mxu0 0
    %945 = vmatpush1.bf16.msra.mxu0 %v907
    %946 = vmatprep.subr.bf16.mxu0 0
    %947 = vmatpush1.bf16.msra.mxu0 %v908
    %948 = vmatprep.subr.bf16.mxu0 0
    %949 = vmatpush1.bf16.msra.mxu0 %v909
    %950 = vmatprep.subr.bf16.mxu0 0
    %951 = vmatpush1.bf16.msra.mxu0 %v910
    %952 = vmatprep.subr.bf16.mxu0 0
    %953 = vmatpush1.bf16.msra.mxu0 %v911
    %954 = vmatprep.subr.bf16.mxu0 0
    %955 = vmatpush1.bf16.msra.mxu0 %v912
    %956 = vmatprep.subr.bf16.mxu0 0
    %957 = vmatpush1.bf16.msra.mxu0 %v913
    %958 = vmatprep.subr.bf16.mxu0 0
    %959 = vmatpush1.bf16.msra.mxu0 %v914
    %960 = vmatprep.subr.bf16.mxu0 0
    %961 = vmatpush1.bf16.msra.mxu0 %v915
    %962 = vmatprep.subr.bf16.mxu0 0
    %963 = vmatpush1.bf16.msra.mxu0 %v916
    %964 = vmatprep.subr.bf16.mxu0 0
    %965 = vmatpush1.bf16.msra.mxu0 %v917
    %966 = vmatprep.mubr.bf16.mxu0 %v798
    %967 = vmatmul.mubr.bf16.gmra.mrb[0].mxu0 %v797
    %v968 = vpop.f32.mrb[0].mxu0
    %v969 = vadd.f32 %v836, %v968
    %v970 = vpop.f32.mrb[0].mxu0
    %v971 = vpop.f32.mrb[0].mxu0
    %v972 = vpop.f32.mrb[0].mxu0
    %973 = vdwg.mxu0
    %v974 = vmul.f32 %v969, 0.5
    %v975 = vmul.f32 %v974, 1.442695
    %v976 = vpow.pop %v975
    %v977 = vld [vmem:[%s2] sm:$0xff]
    %979 = vrot.lane.b32.xlu0 %v976, 120
    %v980 = vpop.permute.xlu0 %979
    %v982 = vmul.f32 %v977, %v980
    %v983 = vadd.f32 %v969, %v982
    %v984 = vpack.c.bf16 %v983, %v983
    %vm985 = vcmask 60416
    %986 = vst.msk [vmem:[#allocation2] sm:$0xf] %vm985, %v984
    %988 = vrot.lane.b32.xlu0 %v80, 8
    %v989 = vpop.permute.xlu0 %988
    %vm991 = vcmask 191552
    %992 = vst.msk [vmem:[#allocation2] sm:$0xf] %vm991, %v989
    %v993 = vld [vmem:[#allocation2] sm:$0xf]
    %v994 = vld [vmem:[%s9] sm:$0xff]
    %v995 = vld [vmem:[%s9 + $0x8] sm:$0xff]
    %v996 = vld [vmem:[%s9 + $0x10] sm:$0xff]
    %v997 = vld [vmem:[%s10] sm:$0x3]
    %v999 = vlaneseq
    %v1000 = vshrl.u32 %v999, 7
    %v1001 = vsub.s32 0, %v1000
    %v1002 = vrot.slane %v997, %v1001
    %v1003 = vlaneseq
    %v1004 = vshrl.u32 %v1003, 7
    %v1005 = vsub.s32 1, %v1004
    %v1006 = vrot.slane %v997, %v1005
    %v1012 = vunpack.c.l.b16 %v994
    %v1013 = vunpack.c.h.b16 %v994
    %v1014 = vunpack.c.l.b16 %v995
    %v1015 = vunpack.c.h.b16 %v995
    %v1016 = vunpack.c.l.b16 %v996
    %v1017 = vunpack.c.h.b16 %v996
    %v1018 = vpack.c.b16 %v1014, %v1012
    %v1019 = vpack.c.b16 %v1015, %v1013
    %v1020 = vpack.c.b16 %v1016, %v1016
    %v1021 = vpack.c.b16 %v1017, %v1017
    %vm1024 = vcmask 195584
    %v1026 = vsel %vm1024, %v993, 0
    %vm1028 = vcmask 1043456
    %v1030 = vsel %vm1028, %v1020, 0
    %v1033 = vsel %vm1028, %v1021, 0
    %1035 = vmatprep.subr.bf16.mxu0 %v1019
    %1036 = vmatpush1.bf16.msra.mxu0 %v1018
    %1037 = vmatprep.subr.bf16.mxu0 %v1033
    %1038 = vmatpush1.bf16.msra.mxu0 %v1030
    %1039 = vmatprep.subr.bf16.mxu0 0
    %1040 = vmatpush1.bf16.msra.mxu0 0
    %1041 = vmatprep.subr.bf16.mxu0 0
    %1042 = vmatpush1.bf16.msra.mxu0 0
    %1043 = vmatprep.subr.bf16.mxu0 0
    %1044 = vmatpush1.bf16.msra.mxu0 0
    %1045 = vmatprep.subr.bf16.mxu0 0
    %1046 = vmatpush1.bf16.msra.mxu0 0
    %1047 = vmatprep.subr.bf16.mxu0 0
    %1048 = vmatpush1.bf16.msra.mxu0 0
    %1049 = vmatprep.subr.bf16.mxu0 0
    %1050 = vmatpush1.bf16.msra.mxu0 0
    %1051 = vmatprep.subr.bf16.mxu0 0
    %1052 = vmatpush1.bf16.msra.mxu0 0
    %1053 = vmatprep.subr.bf16.mxu0 0
    %1054 = vmatpush1.bf16.msra.mxu0 0
    %1055 = vmatprep.subr.bf16.mxu0 0
    %1056 = vmatpush1.bf16.msra.mxu0 0
    %1057 = vmatprep.subr.bf16.mxu0 0
    %1058 = vmatpush1.bf16.msra.mxu0 0
    %1059 = vmatprep.subr.bf16.mxu0 0
    %1060 = vmatpush1.bf16.msra.mxu0 0
    %1061 = vmatprep.subr.bf16.mxu0 0
    %1062 = vmatpush1.bf16.msra.mxu0 0
    %1063 = vmatprep.subr.bf16.mxu0 0
    %1064 = vmatpush1.bf16.msra.mxu0 0
    %1065 = vmatprep.subr.bf16.mxu0 0
    %1066 = vmatpush1.bf16.msra.mxu0 0
    %1067 = vmatprep.mubr.bf16.mxu0 0
    %1068 = vmatmul.mubr.bf16.gmra.mrb[0].mxu0 %v1026
    %v1069 = vpop.f32.mrb[0].mxu0
    %v1070 = vadd.f32 %v1002, %v1069
    %v1071 = vpop.f32.mrb[0].mxu0
    %v1072 = vadd.f32 %v1006, %v1071
    %v1073 = vpop.f32.mrb[0].mxu0
    %v1074 = vpop.f32.mrb[0].mxu0
    %1075 = vdwg.mxu0
    %v1076 = vmax.f32 %v1070, 0.0
    %v1077 = vmax.f32 %v1072, 0.0
    %v1078 = vpack.c.bf16 %v1076, %v1076
    %v1079 = vpack.c.bf16 %v1077, %v1077
    %v1080 = vld [vmem:[#allocation5] sm:$0xff]
    %v1081 = vld [vmem:[#allocation5 + $0x8] sm:$0xff]
    %v1082 = vld [vmem:[#allocation5 + $0x10] sm:$0xff]
    %v1083 = vld [vmem:[#allocation5 + $0x18] sm:$0xff]
    %v1084 = vld [vmem:[#allocation5 + $0x20] sm:$0xff]
    %v1085 = vld [vmem:[#allocation5 + $0x28] sm:$0xff]
    %v1086 = vld [vmem:[#allocation5 + $0x30] sm:$0xff]
    %v1087 = vld [vmem:[#allocation5 + $0x38] sm:$0xff]
    %v1088 = vld [vmem:[#allocation5 + $0x40] sm:$0xff]
    %v1089 = vld [vmem:[#allocation5 + $0x48] sm:$0xff]
    %v1090 = vld [vmem:[#allocation5 + $0x50] sm:$0xff]
    %v1091 = vld [vmem:[#allocation5 + $0x58] sm:$0xff]
    %v1092 = vld [vmem:[#allocation5 + $0x60] sm:$0xff]
    %v1093 = vld [vmem:[#allocation5 + $0x68] sm:$0xff]
    %v1094 = vld [vmem:[#allocation5 + $0x70] sm:$0xff]
    %v1095 = vld [vmem:[#allocation5 + $0x78] sm:$0xff]
    %v1096 = vld [vmem:[#allocation5 + $0x80] sm:$0xff]
    %v1097 = vld [vmem:[#allocation5 + $0x88] sm:$0xff]
    %v1098 = vld [vmem:[#allocation5 + $0x90] sm:$0xff]
    %v1099 = vld [vmem:[#allocation5 + $0x98] sm:$0xff]
    %v1100 = vld [vmem:[#allocation5 + $0xa0] sm:$0xff]
    %v1101 = vld [vmem:[#allocation5 + $0xa8] sm:$0xff]
    %v1102 = vld [vmem:[#allocation5 + $0xb0] sm:$0xff]
    %v1103 = vld [vmem:[#allocation5 + $0xb8] sm:$0xff]
    %v1104 = vld [vmem:[#allocation5 + $0xc0] sm:$0xff]
    %v1105 = vld [vmem:[#allocation5 + $0xc8] sm:$0xff]
    %v1106 = vld [vmem:[#allocation5 + $0xd0] sm:$0xff]
    %v1107 = vld [vmem:[#allocation5 + $0xd8] sm:$0xff]
    %v1108 = vld [vmem:[#allocation5 + $0xe0] sm:$0xff]
    %v1109 = vld [vmem:[#allocation5 + $0xe8] sm:$0xff]
    %v1110 = vld [vmem:[#allocation5 + $0xf0] sm:$0xff]
    %v1111 = vld [vmem:[#allocation5 + $0xf8] sm:$0xff]
    %v1112 = vld [vmem:[#allocation5 + $0x100] sm:$0xff]
    %v1113 = vld [vmem:[#allocation5 + $0x108] sm:$0xff]
    %v1114 = vld [vmem:[#allocation5 + $0x110] sm:$0xff]
    %v1115 = vld [vmem:[#allocation5 + $0x118] sm:$0xff]
    %v1116 = vld [vmem:[#allocation5 + $0x120] sm:$0xff]
    %v1117 = vld [vmem:[#allocation5 + $0x128] sm:$0xff]
    %v1118 = vld [vmem:[#allocation5 + $0x130] sm:$0xff]
    %v1119 = vld [vmem:[#allocation5 + $0x138] sm:$0xff]
    %v1120 = vld [vmem:[#allocation5 + $0x140] sm:$0xff]
    %v1121 = vld [vmem:[#allocation5 + $0x148] sm:$0xff]
    %v1122 = vld [vmem:[#allocation5 + $0x150] sm:$0xff]
    %v1123 = vld [vmem:[#allocation5 + $0x158] sm:$0xff]
    %v1124 = vld [vmem:[#allocation5 + $0x160] sm:$0xff]
    %v1125 = vld [vmem:[#allocation5 + $0x168] sm:$0xff]
    %v1126 = vld [vmem:[#allocation5 + $0x170] sm:$0xff]
    %v1127 = vld [vmem:[#allocation5 + $0x178] sm:$0xff]
    %v1128 = vld [vmem:[#allocation5 + $0x180] sm:$0xff]
    %v1129 = vld [vmem:[#allocation5 + $0x188] sm:$0xff]
    %v1130 = vld [vmem:[#allocation5 + $0x190] sm:$0xff]
    %v1131 = vld [vmem:[#allocation5 + $0x198] sm:$0xff]
    %v1132 = vld [vmem:[#allocation5 + $0x1a0] sm:$0xff]
    %v1133 = vld [vmem:[#allocation5 + $0x1a8] sm:$0xff]
    %v1134 = vld [vmem:[#allocation5 + $0x1b0] sm:$0xff]
    %v1135 = vld [vmem:[#allocation5 + $0x1b8] sm:$0xff]
    %v1136 = vld [vmem:[#allocation5 + $0x1c0] sm:$0xff]
    %v1137 = vld [vmem:[#allocation5 + $0x1c8] sm:$0xff]
    %v1138 = vld [vmem:[#allocation5 + $0x1d0] sm:$0xff]
    %v1139 = vld [vmem:[#allocation5 + $0x1d8] sm:$0xff]
    %v1140 = vld [vmem:[#allocation5 + $0x1e0] sm:$0xff]
    %v1141 = vld [vmem:[#allocation5 + $0x1e8] sm:$0xff]
    %v1142 = vld [vmem:[#allocation5 + $0x1f0] sm:$0xff]
    %v1143 = vld [vmem:[#allocation5 + $0x1f8] sm:$0xff]
    %v1144 = vld [vmem:[%s12] sm:$0xf]
    %v1146 = vlaneseq
    %v1147 = vshrl.u32 %v1146, 7
    %v1148 = vsub.s32 0, %v1147
    %v1149 = vrot.slane %v1144, %v1148
    %v1150 = vlaneseq
    %v1151 = vshrl.u32 %v1150, 7
    %v1152 = vsub.s32 1, %v1151
    %v1153 = vrot.slane %v1144, %v1152
    %v1154 = vlaneseq
    %v1155 = vshrl.u32 %v1154, 7
    %v1156 = vsub.s32 2, %v1155
    %v1157 = vrot.slane %v1144, %v1156
    %v1158 = vlaneseq
    %v1159 = vshrl.u32 %v1158, 7
    %v1160 = vsub.s32 3, %v1159
    %v1161 = vrot.slane %v1144, %v1160
    %v1230 = vunpack.c.l.b16 %v1080
    %v1231 = vunpack.c.h.b16 %v1080
    %v1232 = vunpack.c.l.b16 %v1081
    %v1233 = vunpack.c.h.b16 %v1081
    %v1234 = vunpack.c.l.b16 %v1082
    %v1235 = vunpack.c.h.b16 %v1082
    %v1236 = vunpack.c.l.b16 %v1083
    %v1237 = vunpack.c.h.b16 %v1083
    %v1238 = vunpack.c.l.b16 %v1084
    %v1239 = vunpack.c.h.b16 %v1084
    %v1240 = vunpack.c.l.b16 %v1085
    %v1241 = vunpack.c.h.b16 %v1085
    %v1242 = vunpack.c.l.b16 %v1086
    %v1243 = vunpack.c.h.b16 %v1086
    %v1244 = vunpack.c.l.b16 %v1087
    %v1245 = vunpack.c.h.b16 %v1087
    %v1246 = vunpack.c.l.b16 %v1088
    %v1247 = vunpack.c.h.b16 %v1088
    %v1248 = vunpack.c.l.b16 %v1089
    %v1249 = vunpack.c.h.b16 %v1089
    %v1250 = vunpack.c.l.b16 %v1090
    %v1251 = vunpack.c.h.b16 %v1090
    %v1252 = vunpack.c.l.b16 %v1091
    %v1253 = vunpack.c.h.b16 %v1091
    %v1254 = vunpack.c.l.b16 %v1092
    %v1255 = vunpack.c.h.b16 %v1092
    %v1256 = vunpack.c.l.b16 %v1093
    %v1257 = vunpack.c.h.b16 %v1093
    %v1258 = vunpack.c.l.b16 %v1094
    %v1259 = vunpack.c.h.b16 %v1094
    %v1260 = vunpack.c.l.b16 %v1095
    %v1261 = vunpack.c.h.b16 %v1095
    %v1262 = vunpack.c.l.b16 %v1096
    %v1263 = vunpack.c.h.b16 %v1096
    %v1264 = vunpack.c.l.b16 %v1097
    %v1265 = vunpack.c.h.b16 %v1097
    %v1266 = vunpack.c.l.b16 %v1098
    %v1267 = vunpack.c.h.b16 %v1098
    %v1268 = vunpack.c.l.b16 %v1099
    %v1269 = vunpack.c.h.b16 %v1099
    %v1270 = vunpack.c.l.b16 %v1100
    %v1271 = vunpack.c.h.b16 %v1100
    %v1272 = vunpack.c.l.b16 %v1101
    %v1273 = vunpack.c.h.b16 %v1101
    %v1274 = vunpack.c.l.b16 %v1102
    %v1275 = vunpack.c.h.b16 %v1102
    %v1276 = vunpack.c.l.b16 %v1103
    %v1277 = vunpack.c.h.b16 %v1103
    %v1278 = vunpack.c.l.b16 %v1104
    %v1279 = vunpack.c.h.b16 %v1104
    %v1280 = vunpack.c.l.b16 %v1105
    %v1281 = vunpack.c.h.b16 %v1105
    %v1282 = vunpack.c.l.b16 %v1106
    %v1283 = vunpack.c.h.b16 %v1106
    %v1284 = vunpack.c.l.b16 %v1107
    %v1285 = vunpack.c.h.b16 %v1107
    %v1286 = vunpack.c.l.b16 %v1108
    %v1287 = vunpack.c.h.b16 %v1108
    %v1288 = vunpack.c.l.b16 %v1109
    %v1289 = vunpack.c.h.b16 %v1109
    %v1290 = vunpack.c.l.b16 %v1110
    %v1291 = vunpack.c.h.b16 %v1110
    %v1292 = vunpack.c.l.b16 %v1111
    %v1293 = vunpack.c.h.b16 %v1111
    %v1294 = vunpack.c.l.b16 %v1112
    %v1295 = vunpack.c.h.b16 %v1112
    %v1296 = vunpack.c.l.b16 %v1113
    %v1297 = vunpack.c.h.b16 %v1113
    %v1298 = vunpack.c.l.b16 %v1114
    %v1299 = vunpack.c.h.b16 %v1114
    %v1300 = vunpack.c.l.b16 %v1115
    %v1301 = vunpack.c.h.b16 %v1115
    %v1302 = vunpack.c.l.b16 %v1116
    %v1303 = vunpack.c.h.b16 %v1116
    %v1304 = vunpack.c.l.b16 %v1117
    %v1305 = vunpack.c.h.b16 %v1117
    %v1306 = vunpack.c.l.b16 %v1118
    %v1307 = vunpack.c.h.b16 %v1118
    %v1308 = vunpack.c.l.b16 %v1119
    %v1309 = vunpack.c.h.b16 %v1119
    %v1310 = vunpack.c.l.b16 %v1120
    %v1311 = vunpack.c.h.b16 %v1120
    %v1312 = vunpack.c.l.b16 %v1121
    %v1313 = vunpack.c.h.b16 %v1121
    %v1314 = vunpack.c.l.b16 %v1122
    %v1315 = vunpack.c.h.b16 %v1122
    %v1316 = vunpack.c.l.b16 %v1123
    %v1317 = vunpack.c.h.b16 %v1123
    %v1318 = vunpack.c.l.b16 %v1124
    %v1319 = vunpack.c.h.b16 %v1124
    %v1320 = vunpack.c.l.b16 %v1125
    %v1321 = vunpack.c.h.b16 %v1125
    %v1322 = vunpack.c.l.b16 %v1126
    %v1323 = vunpack.c.h.b16 %v1126
    %v1324 = vunpack.c.l.b16 %v1127
    %v1325 = vunpack.c.h.b16 %v1127
    %v1326 = vunpack.c.l.b16 %v1128
    %v1327 = vunpack.c.h.b16 %v1128
    %v1328 = vunpack.c.l.b16 %v1129
    %v1329 = vunpack.c.h.b16 %v1129
    %v1330 = vunpack.c.l.b16 %v1130
    %v1331 = vunpack.c.h.b16 %v1130
    %v1332 = vunpack.c.l.b16 %v1131
    %v1333 = vunpack.c.h.b16 %v1131
    %v1334 = vunpack.c.l.b16 %v1132
    %v1335 = vunpack.c.h.b16 %v1132
    %v1336 = vunpack.c.l.b16 %v1133
    %v1337 = vunpack.c.h.b16 %v1133
    %v1338 = vunpack.c.l.b16 %v1134
    %v1339 = vunpack.c.h.b16 %v1134
    %v1340 = vunpack.c.l.b16 %v1135
    %v1341 = vunpack.c.h.b16 %v1135
    %v1342 = vunpack.c.l.b16 %v1136
    %v1343 = vunpack.c.h.b16 %v1136
    %v1344 = vunpack.c.l.b16 %v1137
    %v1345 = vunpack.c.h.b16 %v1137
    %v1346 = vunpack.c.l.b16 %v1138
    %v1347 = vunpack.c.h.b16 %v1138
    %v1348 = vunpack.c.l.b16 %v1139
    %v1349 = vunpack.c.h.b16 %v1139
    %v1350 = vunpack.c.l.b16 %v1140
    %v1351 = vunpack.c.h.b16 %v1140
    %v1352 = vunpack.c.l.b16 %v1141
    %v1353 = vunpack.c.h.b16 %v1141
    %v1354 = vunpack.c.l.b16 %v1142
    %v1355 = vunpack.c.h.b16 %v1142
    %v1356 = vunpack.c.l.b16 %v1143
    %v1357 = vunpack.c.h.b16 %v1143
    %v1358 = vpack.c.b16 %v1234, %v1230
    %v1359 = vpack.c.b16 %v1235, %v1231
    %v1360 = vpack.c.b16 %v1236, %v1232
    %v1361 = vpack.c.b16 %v1237, %v1233
    %v1362 = vpack.c.b16 %v1242, %v1238
    %v1363 = vpack.c.b16 %v1243, %v1239
    %v1364 = vpack.c.b16 %v1244, %v1240
    %v1365 = vpack.c.b16 %v1245, %v1241
    %v1366 = vpack.c.b16 %v1250, %v1246
    %v1367 = vpack.c.b16 %v1251, %v1247
    %v1368 = vpack.c.b16 %v1252, %v1248
    %v1369 = vpack.c.b16 %v1253, %v1249
    %v1370 = vpack.c.b16 %v1258, %v1254
    %v1371 = vpack.c.b16 %v1259, %v1255
    %v1372 = vpack.c.b16 %v1260, %v1256
    %v1373 = vpack.c.b16 %v1261, %v1257
    %v1374 = vpack.c.b16 %v1266, %v1262
    %v1375 = vpack.c.b16 %v1267, %v1263
    %v1376 = vpack.c.b16 %v1268, %v1264
    %v1377 = vpack.c.b16 %v1269, %v1265
    %v1378 = vpack.c.b16 %v1274, %v1270
    %v1379 = vpack.c.b16 %v1275, %v1271
    %v1380 = vpack.c.b16 %v1276, %v1272
    %v1381 = vpack.c.b16 %v1277, %v1273
    %v1382 = vpack.c.b16 %v1282, %v1278
    %v1383 = vpack.c.b16 %v1283, %v1279
    %v1384 = vpack.c.b16 %v1284, %v1280
    %v1385 = vpack.c.b16 %v1285, %v1281
    %v1386 = vpack.c.b16 %v1290, %v1286
    %v1387 = vpack.c.b16 %v1291, %v1287
    %v1388 = vpack.c.b16 %v1292, %v1288
    %v1389 = vpack.c.b16 %v1293, %v1289
    %v1390 = vpack.c.b16 %v1298, %v1294
    %v1391 = vpack.c.b16 %v1299, %v1295
    %v1392 = vpack.c.b16 %v1300, %v1296
    %v1393 = vpack.c.b16 %v1301, %v1297
    %v1394 = vpack.c.b16 %v1306, %v1302
    %v1395 = vpack.c.b16 %v1307, %v1303
    %v1396 = vpack.c.b16 %v1308, %v1304
    %v1397 = vpack.c.b16 %v1309, %v1305
    %v1398 = vpack.c.b16 %v1314, %v1310
    %v1399 = vpack.c.b16 %v1315, %v1311
    %v1400 = vpack.c.b16 %v1316, %v1312
    %v1401 = vpack.c.b16 %v1317, %v1313
    %v1402 = vpack.c.b16 %v1322, %v1318
    %v1403 = vpack.c.b16 %v1323, %v1319
    %v1404 = vpack.c.b16 %v1324, %v1320
    %v1405 = vpack.c.b16 %v1325, %v1321
    %v1406 = vpack.c.b16 %v1330, %v1326
    %v1407 = vpack.c.b16 %v1331, %v1327
    %v1408 = vpack.c.b16 %v1332, %v1328
    %v1409 = vpack.c.b16 %v1333, %v1329
    %v1410 = vpack.c.b16 %v1338, %v1334
    %v1411 = vpack.c.b16 %v1339, %v1335
    %v1412 = vpack.c.b16 %v1340, %v1336
    %v1413 = vpack.c.b16 %v1341, %v1337
    %v1414 = vpack.c.b16 %v1346, %v1342
    %v1415 = vpack.c.b16 %v1347, %v1343
    %v1416 = vpack.c.b16 %v1348, %v1344
    %v1417 = vpack.c.b16 %v1349, %v1345
    %v1418 = vpack.c.b16 %v1354, %v1350
    %v1419 = vpack.c.b16 %v1355, %v1351
    %v1420 = vpack.c.b16 %v1356, %v1352
    %v1421 = vpack.c.b16 %v1357, %v1353
    %1486 = vmatprep.subr.bf16.mxu0 %v1359
    %1487 = vmatpush1.bf16.msra.mxu0 %v1358
    %1488 = vmatprep.subr.bf16.mxu0 %v1363
    %1489 = vmatpush1.bf16.msra.mxu0 %v1362
    %1490 = vmatprep.subr.bf16.mxu0 %v1367
    %1491 = vmatpush1.bf16.msra.mxu0 %v1366
    %1492 = vmatprep.subr.bf16.mxu0 %v1371
    %1493 = vmatpush1.bf16.msra.mxu0 %v1370
    %1494 = vmatprep.subr.bf16.mxu0 %v1375
    %1495 = vmatpush1.bf16.msra.mxu0 %v1374
    %1496 = vmatprep.subr.bf16.mxu0 %v1379
    %1497 = vmatpush1.bf16.msra.mxu0 %v1378
    %1498 = vmatprep.subr.bf16.mxu0 %v1383
    %1499 = vmatpush1.bf16.msra.mxu0 %v1382
    %1500 = vmatprep.subr.bf16.mxu0 %v1387
    %1501 = vmatpush1.bf16.msra.mxu0 %v1386
    %1502 = vmatprep.subr.bf16.mxu0 %v1391
    %1503 = vmatpush1.bf16.msra.mxu0 %v1390
    %1504 = vmatprep.subr.bf16.mxu0 %v1395
    %1505 = vmatpush1.bf16.msra.mxu0 %v1394
    %1506 = vmatprep.subr.bf16.mxu0 %v1399
    %1507 = vmatpush1.bf16.msra.mxu0 %v1398
    %1508 = vmatprep.subr.bf16.mxu0 %v1403
    %1509 = vmatpush1.bf16.msra.mxu0 %v1402
    %1510 = vmatprep.subr.bf16.mxu0 %v1407
    %1511 = vmatpush1.bf16.msra.mxu0 %v1406
    %1512 = vmatprep.subr.bf16.mxu0 %v1411
    %1513 = vmatpush1.bf16.msra.mxu0 %v1410
    %1514 = vmatprep.subr.bf16.mxu0 %v1415
    %1515 = vmatpush1.bf16.msra.mxu0 %v1414
    %1516 = vmatprep.subr.bf16.mxu0 %v1419
    %1517 = vmatpush1.bf16.msra.mxu0 %v1418
    %1518 = vmatprep.mubr.bf16.mxu0 %v1079
    %1519 = vmatmul.mubr.bf16.gmra.mrb[0].mxu0 %v1078
    %v1520 = vpop.f32.mrb[0].mxu0
    %v1521 = vadd.f32 %v1149, %v1520
    %v1522 = vpop.f32.mrb[0].mxu0
    %v1523 = vadd.f32 %v1153, %v1522
    %v1524 = vpop.f32.mrb[0].mxu0
    %v1525 = vpop.f32.mrb[0].mxu0
    %1526 = vdwg.mxu0
    %1527 = vmatprep.subr.bf16.mxu0 %v1361
    %1528 = vmatpush1.bf16.msra.mxu0 %v1360
    %1529 = vmatprep.subr.bf16.mxu0 %v1365
    %1530 = vmatpush1.bf16.msra.mxu0 %v1364
    %1531 = vmatprep.subr.bf16.mxu0 %v1369
    %1532 = vmatpush1.bf16.msra.mxu0 %v1368
    %1533 = vmatprep.subr.bf16.mxu0 %v1373
    %1534 = vmatpush1.bf16.msra.mxu0 %v1372
    %1535 = vmatprep.subr.bf16.mxu0 %v1377
    %1536 = vmatpush1.bf16.msra.mxu0 %v1376
    %1537 = vmatprep.subr.bf16.mxu0 %v1381
    %1538 = vmatpush1.bf16.msra.mxu0 %v1380
    %1539 = vmatprep.subr.bf16.mxu0 %v1385
    %1540 = vmatpush1.bf16.msra.mxu0 %v1384
    %1541 = vmatprep.subr.bf16.mxu0 %v1389
    %1542 = vmatpush1.bf16.msra.mxu0 %v1388
    %1543 = vmatprep.subr.bf16.mxu0 %v1393
    %1544 = vmatpush1.bf16.msra.mxu0 %v1392
    %1545 = vmatprep.subr.bf16.mxu0 %v1397
    %1546 = vmatpush1.bf16.msra.mxu0 %v1396
    %1547 = vmatprep.subr.bf16.mxu0 %v1401
    %1548 = vmatpush1.bf16.msra.mxu0 %v1400
    %1549 = vmatprep.subr.bf16.mxu0 %v1405
    %1550 = vmatpush1.bf16.msra.mxu0 %v1404
    %1551 = vmatprep.subr.bf16.mxu0 %v1409
    %1552 = vmatpush1.bf16.msra.mxu0 %v1408
    %1553 = vmatprep.subr.bf16.mxu0 %v1413
    %1554 = vmatpush1.bf16.msra.mxu0 %v1412
    %1555 = vmatprep.subr.bf16.mxu0 %v1417
    %1556 = vmatpush1.bf16.msra.mxu0 %v1416
    %1557 = vmatprep.subr.bf16.mxu0 %v1421
    %1558 = vmatpush1.bf16.msra.mxu0 %v1420
    %1559 = vmatprep.mubr.bf16.mxu0 %v1079
    %1560 = vmatmul.mubr.bf16.gmra.mrb[0].mxu0 %v1078
    %v1561 = vpop.f32.mrb[0].mxu0
    %v1562 = vadd.f32 %v1157, %v1561
    %v1563 = vpop.f32.mrb[0].mxu0
    %v1564 = vadd.f32 %v1161, %v1563
    %v1565 = vpop.f32.mrb[0].mxu0
    %v1566 = vpop.f32.mrb[0].mxu0
    %1567 = vdwg.mxu0
    %v1568 = vmax.f32 %v1521, 0.0
    %v1569 = vmax.f32 %v1523, 0.0
    %v1570 = vmax.f32 %v1562, 0.0
    %v1571 = vmax.f32 %v1564, 0.0
    %v1572 = vpack.c.bf16 %v1568, %v1568
    %v1573 = vpack.c.bf16 %v1569, %v1569
    %v1574 = vpack.c.bf16 %v1570, %v1570
    %v1575 = vpack.c.bf16 %v1571, %v1571
    %v1576 = vld [vmem:[%s13] sm:$0xf]
    %v1577 = vld [vmem:[%s13 + $0x4] sm:$0xf]
    %v1578 = vld [vmem:[%s13 + $0x8] sm:$0xf]
    %v1579 = vld [vmem:[%s13 + $0xc] sm:$0xf]
    %v1580 = vld [vmem:[%s13 + $0x10] sm:$0xf]
    %v1581 = vld [vmem:[%s13 + $0x14] sm:$0xf]
    %v1582 = vld [vmem:[%s13 + $0x18] sm:$0xf]
    %v1583 = vld [vmem:[%s13 + $0x1c] sm:$0xf]
    %v1584 = vld [vmem:[%s13 + $0x20] sm:$0xf]
    %v1585 = vld [vmem:[%s13 + $0x24] sm:$0xf]
    %v1586 = vld [vmem:[%s13 + $0x28] sm:$0xf]
    %v1587 = vld [vmem:[%s13 + $0x2c] sm:$0xf]
    %v1588 = vld [vmem:[%s13 + $0x30] sm:$0xf]
    %v1589 = vld [vmem:[%s13 + $0x34] sm:$0xf]
    %v1590 = vld [vmem:[%s13 + $0x38] sm:$0xf]
    %v1591 = vld [vmem:[%s13 + $0x3c] sm:$0xf]
    %v1592 = vld [vmem:[%s13 + $0x40] sm:$0xf]
    %v1593 = vld [vmem:[%s13 + $0x44] sm:$0xf]
    %v1594 = vld [vmem:[%s13 + $0x48] sm:$0xf]
    %v1595 = vld [vmem:[%s13 + $0x4c] sm:$0xf]
    %v1596 = vld [vmem:[%s13 + $0x50] sm:$0xf]
    %v1597 = vld [vmem:[%s13 + $0x54] sm:$0xf]
    %v1598 = vld [vmem:[%s13 + $0x58] sm:$0xf]
    %v1599 = vld [vmem:[%s13 + $0x5c] sm:$0xf]
    %v1600 = vld [vmem:[%s13 + $0x60] sm:$0xf]
    %v1601 = vld [vmem:[%s13 + $0x64] sm:$0xf]
    %v1602 = vld [vmem:[%s13 + $0x68] sm:$0xf]
    %v1603 = vld [vmem:[%s13 + $0x6c] sm:$0xf]
    %v1604 = vld [vmem:[%s13 + $0x70] sm:$0xf]
    %v1605 = vld [vmem:[%s13 + $0x74] sm:$0xf]
    %v1606 = vld [vmem:[%s13 + $0x78] sm:$0xf]
    %v1607 = vld [vmem:[%s13 + $0x7c] sm:$0xf]
    %v1608 = vld [vmem:[%s13 + $0x80] sm:$0xf]
    %v1609 = vld [vmem:[%s13 + $0x84] sm:$0xf]
    %v1610 = vld [vmem:[%s13 + $0x88] sm:$0xf]
    %v1611 = vld [vmem:[%s13 + $0x8c] sm:$0xf]
    %v1612 = vld [vmem:[%s13 + $0x90] sm:$0xf]
    %v1613 = vld [vmem:[%s13 + $0x94] sm:$0xf]
    %v1614 = vld [vmem:[%s13 + $0x98] sm:$0xf]
    %v1615 = vld [vmem:[%s13 + $0x9c] sm:$0xf]
    %v1616 = vld [vmem:[%s13 + $0xa0] sm:$0xf]
    %v1617 = vld [vmem:[%s13 + $0xa4] sm:$0xf]
    %v1618 = vld [vmem:[%s13 + $0xa8] sm:$0xf]
    %v1619 = vld [vmem:[%s13 + $0xac] sm:$0xf]
    %v1620 = vld [vmem:[%s13 + $0xb0] sm:$0xf]
    %v1621 = vld [vmem:[%s13 + $0xb4] sm:$0xf]
    %v1622 = vld [vmem:[%s13 + $0xb8] sm:$0xf]
    %v1623 = vld [vmem:[%s13 + $0xbc] sm:$0xf]
    %v1624 = vld [vmem:[%s13 + $0xc0] sm:$0xf]
    %v1625 = vld [vmem:[%s13 + $0xc4] sm:$0xf]
    %v1626 = vld [vmem:[%s13 + $0xc8] sm:$0xf]
    %v1627 = vld [vmem:[%s13 + $0xcc] sm:$0xf]
    %v1628 = vld [vmem:[%s13 + $0xd0] sm:$0xf]
    %v1629 = vld [vmem:[%s13 + $0xd4] sm:$0xf]
    %v1630 = vld [vmem:[%s13 + $0xd8] sm:$0xf]
    %v1631 = vld [vmem:[%s13 + $0xdc] sm:$0xf]
    %v1632 = vld [vmem:[%s13 + $0xe0] sm:$0xf]
    %v1633 = vld [vmem:[%s13 + $0xe4] sm:$0xf]
    %v1634 = vld [vmem:[%s13 + $0xe8] sm:$0xf]
    %v1635 = vld [vmem:[%s13 + $0xec] sm:$0xf]
    %v1636 = vld [vmem:[%s13 + $0xf0] sm:$0xf]
    %v1637 = vld [vmem:[%s13 + $0xf4] sm:$0xf]
    %v1638 = vld [vmem:[%s13 + $0xf8] sm:$0xf]
    %v1639 = vld [vmem:[%s13 + $0xfc] sm:$0xf]
    %v1640 = vld [vmem:[%s14] sm:$0x1]
    %v1642 = vlaneseq
    %v1643 = vshrl.u32 %v1642, 7
    %v1644 = vsub.s32 0, %v1643
    %v1645 = vrot.slane %v1640, %v1644
    %v1711 = vunpack.c.l.b16 %v1576
    %v1712 = vunpack.c.l.b16 %v1577
    %v1713 = vunpack.c.l.b16 %v1578
    %v1714 = vunpack.c.l.b16 %v1579
    %v1715 = vunpack.c.l.b16 %v1580
    %v1716 = vunpack.c.l.b16 %v1581
    %v1717 = vunpack.c.l.b16 %v1582
    %v1718 = vunpack.c.l.b16 %v1583
    %v1719 = vunpack.c.l.b16 %v1584
    %v1720 = vunpack.c.l.b16 %v1585
    %v1721 = vunpack.c.l.b16 %v1586
    %v1722 = vunpack.c.l.b16 %v1587
    %v1723 = vunpack.c.l.b16 %v1588
    %v1724 = vunpack.c.l.b16 %v1589
    %v1725 = vunpack.c.l.b16 %v1590
    %v1726 = vunpack.c.l.b16 %v1591
    %v1727 = vunpack.c.l.b16 %v1592
    %v1728 = vunpack.c.l.b16 %v1593
    %v1729 = vunpack.c.l.b16 %v1594
    %v1730 = vunpack.c.l.b16 %v1595
    %v1731 = vunpack.c.l.b16 %v1596
    %v1732 = vunpack.c.l.b16 %v1597
    %v1733 = vunpack.c.l.b16 %v1598
    %v1734 = vunpack.c.l.b16 %v1599
    %v1735 = vunpack.c.l.b16 %v1600
    %v1736 = vunpack.c.l.b16 %v1601
    %v1737 = vunpack.c.l.b16 %v1602
    %v1738 = vunpack.c.l.b16 %v1603
    %v1739 = vunpack.c.l.b16 %v1604
    %v1740 = vunpack.c.l.b16 %v1605
    %v1741 = vunpack.c.l.b16 %v1606
    %v1742 = vunpack.c.l.b16 %v1607
    %v1743 = vunpack.c.l.b16 %v1608
    %v1744 = vunpack.c.l.b16 %v1609
    %v1745 = vunpack.c.l.b16 %v1610
    %v1746 = vunpack.c.l.b16 %v1611
    %v1747 = vunpack.c.l.b16 %v1612
    %v1748 = vunpack.c.l.b16 %v1613
    %v1749 = vunpack.c.l.b16 %v1614
    %v1750 = vunpack.c.l.b16 %v1615
    %v1751 = vunpack.c.l.b16 %v1616
    %v1752 = vunpack.c.l.b16 %v1617
    %v1753 = vunpack.c.l.b16 %v1618
    %v1754 = vunpack.c.l.b16 %v1619
    %v1755 = vunpack.c.l.b16 %v1620
    %v1756 = vunpack.c.l.b16 %v1621
    %v1757 = vunpack.c.l.b16 %v1622
    %v1758 = vunpack.c.l.b16 %v1623
    %v1759 = vunpack.c.l.b16 %v1624
    %v1760 = vunpack.c.l.b16 %v1625
    %v1761 = vunpack.c.l.b16 %v1626
    %v1762 = vunpack.c.l.b16 %v1627
    %v1763 = vunpack.c.l.b16 %v1628
    %v1764 = vunpack.c.l.b16 %v1629
    %v1765 = vunpack.c.l.b16 %v1630
    %v1766 = vunpack.c.l.b16 %v1631
    %v1767 = vunpack.c.l.b16 %v1632
    %v1768 = vunpack.c.l.b16 %v1633
    %v1769 = vunpack.c.l.b16 %v1634
    %v1770 = vunpack.c.l.b16 %v1635
    %v1771 = vunpack.c.l.b16 %v1636
    %v1772 = vunpack.c.l.b16 %v1637
    %v1773 = vunpack.c.l.b16 %v1638
    %v1774 = vunpack.c.l.b16 %v1639
    %v1775 = vpack.c.b16 %v1712, %v1711
    %v1776 = vpack.c.b16 %v1714, %v1713
    %v1777 = vpack.c.b16 %v1716, %v1715
    %v1778 = vpack.c.b16 %v1718, %v1717
    %v1779 = vpack.c.b16 %v1720, %v1719
    %v1780 = vpack.c.b16 %v1722, %v1721
    %v1781 = vpack.c.b16 %v1724, %v1723
    %v1782 = vpack.c.b16 %v1726, %v1725
    %v1783 = vpack.c.b16 %v1728, %v1727
    %v1784 = vpack.c.b16 %v1730, %v1729
    %v1785 = vpack.c.b16 %v1732, %v1731
    %v1786 = vpack.c.b16 %v1734, %v1733
    %v1787 = vpack.c.b16 %v1736, %v1735
    %v1788 = vpack.c.b16 %v1738, %v1737
    %v1789 = vpack.c.b16 %v1740, %v1739
    %v1790 = vpack.c.b16 %v1742, %v1741
    %v1791 = vpack.c.b16 %v1744, %v1743
    %v1792 = vpack.c.b16 %v1746, %v1745
    %v1793 = vpack.c.b16 %v1748, %v1747
    %v1794 = vpack.c.b16 %v1750, %v1749
    %v1795 = vpack.c.b16 %v1752, %v1751
    %v1796 = vpack.c.b16 %v1754, %v1753
    %v1797 = vpack.c.b16 %v1756, %v1755
    %v1798 = vpack.c.b16 %v1758, %v1757
    %v1799 = vpack.c.b16 %v1760, %v1759
    %v1800 = vpack.c.b16 %v1762, %v1761
    %v1801 = vpack.c.b16 %v1764, %v1763
    %v1802 = vpack.c.b16 %v1766, %v1765
    %v1803 = vpack.c.b16 %v1768, %v1767
    %v1804 = vpack.c.b16 %v1770, %v1769
    %v1805 = vpack.c.b16 %v1772, %v1771
    %v1806 = vpack.c.b16 %v1774, %v1773
    %1839 = vmatprep.subr.bf16.mxu0 0
    %1840 = vmatpush1.bf16.msra.mxu0 %v1775
    %1841 = vmatprep.subr.bf16.mxu0 0
    %1842 = vmatpush1.bf16.msra.mxu0 %v1776
    %1843 = vmatprep.subr.bf16.mxu0 0
    %1844 = vmatpush1.bf16.msra.mxu0 %v1777
    %1845 = vmatprep.subr.bf16.mxu0 0
    %1846 = vmatpush1.bf16.msra.mxu0 %v1778
    %1847 = vmatprep.subr.bf16.mxu0 0
    %1848 = vmatpush1.bf16.msra.mxu0 %v1779
    %1849 = vmatprep.subr.bf16.mxu0 0
    %1850 = vmatpush1.bf16.msra.mxu0 %v1780
    %1851 = vmatprep.subr.bf16.mxu0 0
    %1852 = vmatpush1.bf16.msra.mxu0 %v1781
    %1853 = vmatprep.subr.bf16.mxu0 0
    %1854 = vmatpush1.bf16.msra.mxu0 %v1782
    %1855 = vmatprep.subr.bf16.mxu0 0
    %1856 = vmatpush1.bf16.msra.mxu0 %v1783
    %1857 = vmatprep.subr.bf16.mxu0 0
    %1858 = vmatpush1.bf16.msra.mxu0 %v1784
    %1859 = vmatprep.subr.bf16.mxu0 0
    %1860 = vmatpush1.bf16.msra.mxu0 %v1785
    %1861 = vmatprep.subr.bf16.mxu0 0
    %1862 = vmatpush1.bf16.msra.mxu0 %v1786
    %1863 = vmatprep.subr.bf16.mxu0 0
    %1864 = vmatpush1.bf16.msra.mxu0 %v1787
    %1865 = vmatprep.subr.bf16.mxu0 0
    %1866 = vmatpush1.bf16.msra.mxu0 %v1788
    %1867 = vmatprep.subr.bf16.mxu0 0
    %1868 = vmatpush1.bf16.msra.mxu0 %v1789
    %1869 = vmatprep.subr.bf16.mxu0 0
    %1870 = vmatpush1.bf16.msra.mxu0 %v1790
    %1871 = vmatprep.mubr.bf16.mxu0 %v1573
    %1872 = vmatmul.mubr.bf16.gmra.mrb[0].mxu0 %v1572
    %v1873 = vpop.f32.mrb[0].mxu0
    %v1874 = vadd.f32 %v1645, %v1873
    %v1875 = vpop.f32.mrb[0].mxu0
    %v1876 = vpop.f32.mrb[0].mxu0
    %v1877 = vpop.f32.mrb[0].mxu0
    %1878 = vdwg.mxu0
    %1879 = vmatprep.subr.bf16.mxu0 0
    %1880 = vmatpush1.bf16.msra.mxu0 %v1791
    %1881 = vmatprep.subr.bf16.mxu0 0
    %1882 = vmatpush1.bf16.msra.mxu0 %v1792
    %1883 = vmatprep.subr.bf16.mxu0 0
    %1884 = vmatpush1.bf16.msra.mxu0 %v1793
    %1885 = vmatprep.subr.bf16.mxu0 0
    %1886 = vmatpush1.bf16.msra.mxu0 %v1794
    %1887 = vmatprep.subr.bf16.mxu0 0
    %1888 = vmatpush1.bf16.msra.mxu0 %v1795
    %1889 = vmatprep.subr.bf16.mxu0 0
    %1890 = vmatpush1.bf16.msra.mxu0 %v1796
    %1891 = vmatprep.subr.bf16.mxu0 0
    %1892 = vmatpush1.bf16.msra.mxu0 %v1797
    %1893 = vmatprep.subr.bf16.mxu0 0
    %1894 = vmatpush1.bf16.msra.mxu0 %v1798
    %1895 = vmatprep.subr.bf16.mxu0 0
    %1896 = vmatpush1.bf16.msra.mxu0 %v1799
    %1897 = vmatprep.subr.bf16.mxu0 0
    %1898 = vmatpush1.bf16.msra.mxu0 %v1800
    %1899 = vmatprep.subr.bf16.mxu0 0
    %1900 = vmatpush1.bf16.msra.mxu0 %v1801
    %1901 = vmatprep.subr.bf16.mxu0 0
    %1902 = vmatpush1.bf16.msra.mxu0 %v1802
    %1903 = vmatprep.subr.bf16.mxu0 0
    %1904 = vmatpush1.bf16.msra.mxu0 %v1803
    %1905 = vmatprep.subr.bf16.mxu0 0
    %1906 = vmatpush1.bf16.msra.mxu0 %v1804
    %1907 = vmatprep.subr.bf16.mxu0 0
    %1908 = vmatpush1.bf16.msra.mxu0 %v1805
    %1909 = vmatprep.subr.bf16.mxu0 0
    %1910 = vmatpush1.bf16.msra.mxu0 %v1806
    %1911 = vmatprep.mubr.bf16.mxu0 %v1575
    %1912 = vmatmul.mubr.bf16.gmra.mrb[0].mxu0 %v1574
    %v1913 = vpop.f32.mrb[0].mxu0
    %v1914 = vadd.f32 %v1874, %v1913
    %v1915 = vpop.f32.mrb[0].mxu0
    %v1916 = vpop.f32.mrb[0].mxu0
    %v1917 = vpop.f32.mrb[0].mxu0
    %1918 = vdwg.mxu0
    %v1919 = vsub.f32 0.0, %v1914
    %v1920 = vmul.f32 %v1919, 1.442695
    %v1921 = vpow.pop %v1920
    %v1922 = vadd.f32 %v1921, 1.0
    %v1923 = vrcp.pop %v1922
    %vm1924 = vcmask 523264
    %1925 = vst.msk [vmem:[%s15] sm:$0xff] %vm1924, %v1923
    %1927 = vrot.lane.b32.xlu0 %v969, 64
    %v1928 = vpop.permute.xlu0 %1927
    %vm1930 = vcmask 654848
    %1931 = vst.msk [vmem:[%s15] sm:$0xff] %vm1930, %v1928
    // Predicated region
    $region70: #{cvae_forward.1} parent=1 // pred_check
      _
    $region71: #{cvae_forward.1} parent=1 // pred_check_branch
      %1933 = sbr.rel (0) target = $region73
    $region72: #{cvae_forward.1} parent=1 // pred_region
      _
    $region73: #{cvae_forward.1} parent=1 // pred_fallthru
      _
    // Predicated region
    $region74: #{cvae_forward.1} parent=1 // pred_check
      _
    $region75: #{cvae_forward.1} parent=1 // pred_check_branch
      %1935 = sbr.rel (0) target = $region77
    $region76: #{cvae_forward.1} parent=1 // pred_region
      _
    $region77: #{cvae_forward.1} parent=1 // pred_fallthru
      _
    %1936 = vsyncpa [#allocation4], 1
    %1937 = vsyncpa [#allocation6], 1

</llo_original>
